<compile_context>
chip_gen: v7x
topology: tpu7x:2x2x1
jax: 0.10.0
libtpu: 0.0.40
codegen_flags: <defaults>
</compile_context>

<pallas_src>
import functools
import math

import jax
import jax.numpy as jnp
import numpy as np
from jax import lax
from jax.experimental import pallas as pl
from jax.experimental.pallas import tpu as pltpu

LANE = 128


def _pad_to(a, shape):
    """Zero-pad the trailing edge of every axis of `a` up to `shape`."""
    pads = [(0, t - s) for s, t in zip(a.shape, shape)]
    return jnp.pad(a, pads)


# ----------------------------------------------------------------------------
# Fused kernel: input proj + PE -> TemporalBlock x L -> LayerNorm.
# One grid step per batch element; everything stays on-chip.
# ----------------------------------------------------------------------------
def _fused_encoder_kernel(x_ref, pw_ref, pbpe_ref, w1_ref, b1_ref, w2_ref,
                          b2_ref, wd_ref, bd_ref, g_ref, beta_ref, o_ref, *,
                          K, dilations, has_down, true_c, eps):
    T, Cp = x_ref.shape[1], x_ref.shape[2]

    # input projection (Linear) fused with the (bias + positional encoding) add
    h = jnp.dot(x_ref[0], pw_ref[...], preferred_element_type=jnp.float32)
    h = h + pbpe_ref[...]

    def shift_down(y, s):
        # z[t] = y[t - s] for t >= s else 0: the causal left pad expressed as
        # an in-register sublane shift (no HBM pad, no padded VMEM buffer).
        if s == 0:
            return y
        zeros = jnp.zeros((s, Cp), jnp.float32)
        return jnp.concatenate([zeros, y[:T - s, :]], axis=0)

    def causal_conv(inp, w_stack_ref, b_stack_ref, lvl, d):
        # K dilated taps, each a lane-dense (T, 128) @ (128, 128) MXU matmul,
        # accumulated in f32.  Accumulator is seeded with bias + first tap.
        acc = b_stack_ref[lvl] + jnp.dot(
            shift_down(inp, (K - 1) * d), w_stack_ref[lvl * K],
            preferred_element_type=jnp.float32)
        for k in range(1, K):
            acc = acc + jnp.dot(shift_down(inp, (K - 1 - k) * d),
                                w_stack_ref[lvl * K + k],
                                preferred_element_type=jnp.float32)
        return acc

    # TemporalBlocks (dropout1 / dropout2 are identity at inference)
    for i, d in enumerate(dilations):
        h1 = jnp.maximum(causal_conv(h, w1_ref, b1_ref, i, d), 0.0)
        h2 = jnp.maximum(causal_conv(h1, w2_ref, b2_ref, i, d), 0.0)
        if has_down[i]:
            res = jnp.dot(h, wd_ref[i], preferred_element_type=jnp.float32)
            res = res + bd_ref[i]
        else:
            res = h
        h = jnp.maximum(h2 + res, 0.0)

    # final LayerNorm over the true channel count (padded lanes of h are 0)
    inv_c = 1.0 / float(true_c)
    lane = lax.broadcasted_iota(jnp.int32, (T, Cp), 1)   # hoisted, used once
    mean = jnp.sum(h, axis=-1, keepdims=True) * inv_c
    centered = jnp.where(lane < true_c, h - mean, 0.0)
    var = jnp.sum(centered * centered, axis=-1, keepdims=True) * inv_c
    xn = (h - mean) * lax.rsqrt(var + eps)                # rsqrt -> EUP slot
    o_ref[0] = xn * g_ref[...] + beta_ref[...]


def forward_pallas(x, params, *, kernel_size):
    K = kernel_size
    B, T, _ = x.shape
    blocks = params["blocks"]
    L = len(blocks)
    C = params["ln_g"].shape[0]
    Cp = LANE

    # ---- host-side packing: lane-pad channel axes to 128, stack per level ----
    xp = _pad_to(x, (B, T, Cp))
    pw = _pad_to(params["proj_w"], (Cp, Cp))
    pbpe = _pad_to(params["pe"] + params["proj_b"][None, :], (T, Cp))
    w1s = jnp.concatenate([_pad_to(b["w1"], (K, Cp, Cp)) for b in blocks], 0)
    w2s = jnp.concatenate([_pad_to(b["w2"], (K, Cp, Cp)) for b in blocks], 0)
    b1s = jnp.stack([_pad_to(b["b1"][None, :], (1, Cp)) for b in blocks])
    b2s = jnp.stack([_pad_to(b["b2"][None, :], (1, Cp)) for b in blocks])
    has_down = tuple("wd" in b for b in blocks)
    wds = jnp.stack([_pad_to(b["wd"], (Cp, Cp)) if "wd" in b
                     else jnp.zeros((Cp, Cp), jnp.float32) for b in blocks])
    bds = jnp.stack([_pad_to(b["bd"][None, :], (1, Cp)) if "bd" in b
                     else jnp.zeros((1, Cp), jnp.float32) for b in blocks])
    g = _pad_to(params["ln_g"][None, :], (1, Cp))
    be = _pad_to(params["ln_b"][None, :], (1, Cp))

    dilations = tuple(2 ** i for i in range(L))
    kernel = functools.partial(_fused_encoder_kernel, K=K, dilations=dilations,
                               has_down=has_down, true_c=C, eps=1e-5)

    out_p = pl.pallas_call(
        kernel,
        out_shape=jax.ShapeDtypeStruct((B, T, Cp), jnp.float32),
        grid=(B,),
        in_specs=[
            pl.BlockSpec((1, T, Cp), lambda b: (b, 0, 0)),        # x
            pl.BlockSpec((Cp, Cp), lambda b: (0, 0)),             # proj W
            pl.BlockSpec((T, Cp), lambda b: (0, 0)),              # proj b + PE
            pl.BlockSpec((L * K, Cp, Cp), lambda b: (0, 0, 0)),   # conv1 W
            pl.BlockSpec((L, 1, Cp), lambda b: (0, 0, 0)),        # conv1 b
            pl.BlockSpec((L * K, Cp, Cp), lambda b: (0, 0, 0)),   # conv2 W
            pl.BlockSpec((L, 1, Cp), lambda b: (0, 0, 0)),        # conv2 b
            pl.BlockSpec((L, Cp, Cp), lambda b: (0, 0, 0)),       # downsample W
            pl.BlockSpec((L, 1, Cp), lambda b: (0, 0, 0)),        # downsample b
            pl.BlockSpec((1, Cp), lambda b: (0, 0)),              # LN gamma
            pl.BlockSpec((1, Cp), lambda b: (0, 0)),              # LN beta
        ],
        out_specs=pl.BlockSpec((1, T, Cp), lambda b: (b, 0, 0)),
        compiler_params=pltpu.CompilerParams(
            dimension_semantics=("parallel",)),
    )(xp, pw, pbpe, w1s, b1s, w2s, b2s, wds, bds, g, be)

    return out_p[:, :, :C]


# ----------------------------------------------------------------------------
# Pure-JAX reference for validation (f32, channels-last math).
# ----------------------------------------------------------------------------
def forward_ref(x, params, *, kernel_size):
    K = kernel_size
    h = x @ params["proj_w"] + params["proj_b"] + params["pe"]
    _, T, _ = h.shape
    for i, blk in enumerate(params["blocks"]):
        d = 2 ** i
        pad = (K - 1) * d

        def causal_conv(inp, w, b):
            xp = jnp.pad(inp, ((0, 0), (pad, 0), (0, 0)))
            out = sum(xp[:, k * d:k * d + T, :] @ w[k] for k in range(K))
            return out + b

        h1 = jnp.maximum(causal_conv(h, blk["w1"], blk["b1"]), 0.0)
        h2 = jnp.maximum(causal_conv(h1, blk["w2"], blk["b2"]), 0.0)
        res = h @ blk["wd"] + blk["bd"] if "wd" in blk else h
        h = jnp.maximum(h2 + res, 0.0)
    mean = jnp.mean(h, axis=-1, keepdims=True)
    var = jnp.mean(jnp.square(h - mean), axis=-1, keepdims=True)
    hn = (h - mean) * lax.rsqrt(var + 1e-5)
    return hn * params["ln_g"] + params["ln_b"]


# ----------------------------------------------------------------------------
# Deterministic parameter construction (synthetic; PyTorch-like fan-in scale).
# ----------------------------------------------------------------------------
def positional_encoding_table(T, d_model):
    position = np.arange(T, dtype=np.float32)[:, None]
    div_term = np.exp(np.arange(0, d_model, 2, dtype=np.float32)
                      * (-math.log(10000.0) / d_model))
    pe = np.zeros((T, d_model), dtype=np.float32)
    pe[:, 0::2] = np.sin(position * div_term)
    pe[:, 1::2] = np.cos(position * div_term)
    return jnp.asarray(pe)


def make_params(key, *, input_dim, proj_dim, tcn_out_dim, seq_len,
                num_levels, kernel_size):
    def uniform(k, shape, fan_in):
        bound = 1.0 / math.sqrt(fan_in)
        return jax.random.uniform(k, shape, jnp.float32, -bound, bound)

    keys = iter(jax.random.split(key, 64))
    params = {
        "proj_w": uniform(next(keys), (input_dim, proj_dim), input_dim),
        "proj_b": uniform(next(keys), (proj_dim,), input_dim),
        "pe": positional_encoding_table(seq_len, proj_dim),
        "blocks": [],
        "ln_g": jnp.ones((tcn_out_dim,), jnp.float32),
        "ln_b": jnp.zeros((tcn_out_dim,), jnp.float32),
    }
    cin = proj_dim
    for _ in range(num_levels):
        cout = tcn_out_dim
        blk = {
            "w1": uniform(next(keys), (kernel_size, cin, cout), cin * kernel_size),
            "b1": uniform(next(keys), (cout,), cin * kernel_size),
            "w2": uniform(next(keys), (kernel_size, cout, cout), cout * kernel_size),
            "b2": uniform(next(keys), (cout,), cout * kernel_size),
        }
        if cin != cout:
            blk["wd"] = uniform(next(keys), (cin, cout), cin)
            blk["bd"] = uniform(next(keys), (cout,), cin)
        params["blocks"].append(blk)
        cin = cout
    return params


if __name__ == "__main__":
    B, T = 2, 16
    input_dim, proj_dim, tcn_out_dim = 8, 16, 32
    num_levels, kernel_size = 2, 3
    # dropout=0.1 in the PyTorch module -> identity at inference time.

    key = jax.random.PRNGKey(0)
    kx, kp = jax.random.split(key)
    x = jax.random.normal(kx, (B, T, input_dim), jnp.float32)
    params = make_params(kp, input_dim=input_dim, proj_dim=proj_dim,
                         tcn_out_dim=tcn_out_dim, seq_len=T,
                         num_levels=num_levels, kernel_size=kernel_size)

    fwd = jax.jit(functools.partial(forward_pallas, kernel_size=kernel_size))
    out = jax.block_until_ready(fwd(x, params))

    ref = forward_ref(x, params, kernel_size=kernel_size)
    np.testing.assert_allclose(np.asarray(out), np.asarray(ref),
                               rtol=1e-4, atol=1e-5)
    assert out.shape == (B, T, tcn_out_dim)
    print("KERNEL_OK")
</pallas_src>

<mosaic_0001>
module attributes {stable_mosaic.version = 11 : i64} {
  func.func @_fused_encoder_kernel(%arg0: i32, %arg1: memref<1x16x128xf32, #tpu.memory_space<vmem>>, %arg2: memref<128x128xf32, #tpu.memory_space<vmem>>, %arg3: memref<16x128xf32, #tpu.memory_space<vmem>>, %arg4: memref<6x128x128xf32, #tpu.memory_space<vmem>>, %arg5: memref<2x1x128xf32, #tpu.memory_space<vmem>>, %arg6: memref<6x128x128xf32, #tpu.memory_space<vmem>>, %arg7: memref<2x1x128xf32, #tpu.memory_space<vmem>>, %arg8: memref<2x128x128xf32, #tpu.memory_space<vmem>>, %arg9: memref<2x1x128xf32, #tpu.memory_space<vmem>>, %arg10: memref<1x128xf32, #tpu.memory_space<vmem>>, %arg11: memref<1x128xf32, #tpu.memory_space<vmem>>, %arg12: memref<1x16x128xf32, #tpu.memory_space<vmem>>) attributes {dimension_semantics = [#tpu.dimension_semantics<parallel>], iteration_bounds = array<i64: 2>, scalar_prefetch = 0 : i64, scratch_operands = 0 : i64, tpu.core_type = #tpu.core_type<tc>, window_params = [{transform_indices = @transform_0, window_bounds = array<i64: 1, 16, 128>}, {pipeline_mode = #tpu.pipeline_mode<synchronous>, transform_indices = @transform_1, window_bounds = array<i64: 128, 128>}, {pipeline_mode = #tpu.pipeline_mode<synchronous>, transform_indices = @transform_2, window_bounds = array<i64: 16, 128>}, {pipeline_mode = #tpu.pipeline_mode<synchronous>, transform_indices = @transform_3, window_bounds = array<i64: 6, 128, 128>}, {pipeline_mode = #tpu.pipeline_mode<synchronous>, transform_indices = @transform_4, window_bounds = array<i64: 2, 1, 128>}, {pipeline_mode = #tpu.pipeline_mode<synchronous>, transform_indices = @transform_5, window_bounds = array<i64: 6, 128, 128>}, {pipeline_mode = #tpu.pipeline_mode<synchronous>, transform_indices = @transform_6, window_bounds = array<i64: 2, 1, 128>}, {pipeline_mode = #tpu.pipeline_mode<synchronous>, transform_indices = @transform_7, window_bounds = array<i64: 2, 128, 128>}, {pipeline_mode = #tpu.pipeline_mode<synchronous>, transform_indices = @transform_8, window_bounds = array<i64: 2, 1, 128>}, {pipeline_mode = #tpu.pipeline_mode<synchronous>, transform_indices = @transform_9, window_bounds = array<i64: 1, 128>}, {pipeline_mode = #tpu.pipeline_mode<synchronous>, transform_indices = @transform_10, window_bounds = array<i64: 1, 128>}, {transform_indices = @transform_11, window_bounds = array<i64: 1, 16, 128>}]} {
    %c0 = arith.constant 0 : index
    %c0_0 = arith.constant 0 : index
    %c0_1 = arith.constant 0 : index
    %0 = vector.load %arg1[%c0, %c0_0, %c0_1] : memref<1x16x128xf32, #tpu.memory_space<vmem>>, vector<1x16x128xf32>
    %1 = vector.shape_cast %0 : vector<1x16x128xf32> to vector<16x128xf32>
    %c0_2 = arith.constant 0 : index
    %c0_3 = arith.constant 0 : index
    %2 = vector.load %arg2[%c0_2, %c0_3] : memref<128x128xf32, #tpu.memory_space<vmem>>, vector<128x128xf32>
    %cst = arith.constant dense<0.000000e+00> : vector<16x128xf32>
    %3 = tpu.matmul %1, %2, %cst {dimension_numbers = #tpu.dot_dimension_numbers<[1], [0], [0], [1], [0, 0, 1, 1], [], []>} : vector<16x128xf32>, vector<128x128xf32>, vector<16x128xf32> -> vector<16x128xf32>
    %c0_4 = arith.constant 0 : index
    %c0_5 = arith.constant 0 : index
    %4 = vector.load %arg3[%c0_4, %c0_5] : memref<16x128xf32, #tpu.memory_space<vmem>>, vector<16x128xf32>
    %5 = arith.addf %3, %4 : vector<16x128xf32>
    %c0_6 = arith.constant 0 : index
    %c0_7 = arith.constant 0 : index
    %c0_8 = arith.constant 0 : index
    %6 = vector.load %arg5[%c0_6, %c0_7, %c0_8] : memref<2x1x128xf32, #tpu.memory_space<vmem>>, vector<1x1x128xf32>
    %7 = vector.shape_cast %6 : vector<1x1x128xf32> to vector<1x128xf32>
    %cst_9 = arith.constant 0.000000e+00 : f32
    %8 = vector.broadcast %cst_9 : f32 to vector<2x128xf32>
    %9 = vector.extract_strided_slice %5 {offsets = [0, 0], sizes = [14, 128], strides = [1, 1]} : vector<16x128xf32> to vector<14x128xf32>
    %10 = tpu.concatenate %8, %9 in 0 : vector<2x128xf32>, vector<14x128xf32> -> vector<16x128xf32>
    %c0_10 = arith.constant 0 : index
    %c0_11 = arith.constant 0 : index
    %c0_12 = arith.constant 0 : index
    %11 = vector.load %arg4[%c0_10, %c0_11, %c0_12] : memref<6x128x128xf32, #tpu.memory_space<vmem>>, vector<1x128x128xf32>
    %12 = vector.shape_cast %11 : vector<1x128x128xf32> to vector<128x128xf32>
    %cst_13 = arith.constant dense<0.000000e+00> : vector<16x128xf32>
    %13 = tpu.matmul %10, %12, %cst_13 {dimension_numbers = #tpu.dot_dimension_numbers<[1], [0], [0], [1], [0, 0, 1, 1], [], []>} : vector<16x128xf32>, vector<128x128xf32>, vector<16x128xf32> -> vector<16x128xf32>
    %14 = vector.broadcast %7 : vector<1x128xf32> to vector<16x128xf32>
    %15 = arith.addf %14, %13 : vector<16x128xf32>
    %cst_14 = arith.constant 0.000000e+00 : f32
    %16 = vector.broadcast %cst_14 : f32 to vector<1x128xf32>
    %17 = vector.extract_strided_slice %5 {offsets = [0, 0], sizes = [15, 128], strides = [1, 1]} : vector<16x128xf32> to vector<15x128xf32>
    %18 = tpu.concatenate %16, %17 in 0 : vector<1x128xf32>, vector<15x128xf32> -> vector<16x128xf32>
    %c1 = arith.constant 1 : index
    %c0_15 = arith.constant 0 : index
    %c0_16 = arith.constant 0 : index
    %19 = vector.load %arg4[%c1, %c0_15, %c0_16] : memref<6x128x128xf32, #tpu.memory_space<vmem>>, vector<1x128x128xf32>
    %20 = vector.shape_cast %19 : vector<1x128x128xf32> to vector<128x128xf32>
    %cst_17 = arith.constant dense<0.000000e+00> : vector<16x128xf32>
    %21 = tpu.matmul %18, %20, %cst_17 {dimension_numbers = #tpu.dot_dimension_numbers<[1], [0], [0], [1], [0, 0, 1, 1], [], []>} : vector<16x128xf32>, vector<128x128xf32>, vector<16x128xf32> -> vector<16x128xf32>
    %22 = arith.addf %15, %21 : vector<16x128xf32>
    %c2 = arith.constant 2 : index
    %c0_18 = arith.constant 0 : index
    %c0_19 = arith.constant 0 : index
    %23 = vector.load %arg4[%c2, %c0_18, %c0_19] : memref<6x128x128xf32, #tpu.memory_space<vmem>>, vector<1x128x128xf32>
    %24 = vector.shape_cast %23 : vector<1x128x128xf32> to vector<128x128xf32>
    %cst_20 = arith.constant dense<0.000000e+00> : vector<16x128xf32>
    %25 = tpu.matmul %5, %24, %cst_20 {dimension_numbers = #tpu.dot_dimension_numbers<[1], [0], [0], [1], [0, 0, 1, 1], [], []>} : vector<16x128xf32>, vector<128x128xf32>, vector<16x128xf32> -> vector<16x128xf32>
    %26 = arith.addf %22, %25 : vector<16x128xf32>
    %cst_21 = arith.constant 0.000000e+00 : f32
    %27 = vector.broadcast %cst_21 : f32 to vector<16x128xf32>
    %28 = arith.maximumf %26, %27 : vector<16x128xf32>
    %c0_22 = arith.constant 0 : index
    %c0_23 = arith.constant 0 : index
    %c0_24 = arith.constant 0 : index
    %29 = vector.load %arg7[%c0_22, %c0_23, %c0_24] : memref<2x1x128xf32, #tpu.memory_space<vmem>>, vector<1x1x128xf32>
    %30 = vector.shape_cast %29 : vector<1x1x128xf32> to vector<1x128xf32>
    %cst_25 = arith.constant 0.000000e+00 : f32
    %31 = vector.broadcast %cst_25 : f32 to vector<2x128xf32>
    %32 = vector.extract_strided_slice %28 {offsets = [0, 0], sizes = [14, 128], strides = [1, 1]} : vector<16x128xf32> to vector<14x128xf32>
    %33 = tpu.concatenate %31, %32 in 0 : vector<2x128xf32>, vector<14x128xf32> -> vector<16x128xf32>
    %c0_26 = arith.constant 0 : index
    %c0_27 = arith.constant 0 : index
    %c0_28 = arith.constant 0 : index
    %34 = vector.load %arg6[%c0_26, %c0_27, %c0_28] : memref<6x128x128xf32, #tpu.memory_space<vmem>>, vector<1x128x128xf32>
    %35 = vector.shape_cast %34 : vector<1x128x128xf32> to vector<128x128xf32>
    %cst_29 = arith.constant dense<0.000000e+00> : vector<16x128xf32>
    %36 = tpu.matmul %33, %35, %cst_29 {dimension_numbers = #tpu.dot_dimension_numbers<[1], [0], [0], [1], [0, 0, 1, 1], [], []>} : vector<16x128xf32>, vector<128x128xf32>, vector<16x128xf32> -> vector<16x128xf32>
    %37 = vector.broadcast %30 : vector<1x128xf32> to vector<16x128xf32>
    %38 = arith.addf %37, %36 : vector<16x128xf32>
    %cst_30 = arith.constant 0.000000e+00 : f32
    %39 = vector.broadcast %cst_30 : f32 to vector<1x128xf32>
    %40 = vector.extract_strided_slice %28 {offsets = [0, 0], sizes = [15, 128], strides = [1, 1]} : vector<16x128xf32> to vector<15x128xf32>
    %41 = tpu.concatenate %39, %40 in 0 : vector<1x128xf32>, vector<15x128xf32> -> vector<16x128xf32>
    %c1_31 = arith.constant 1 : index
    %c0_32 = arith.constant 0 : index
    %c0_33 = arith.constant 0 : index
    %42 = vector.load %arg6[%c1_31, %c0_32, %c0_33] : memref<6x128x128xf32, #tpu.memory_space<vmem>>, vector<1x128x128xf32>
    %43 = vector.shape_cast %42 : vector<1x128x128xf32> to vector<128x128xf32>
    %cst_34 = arith.constant dense<0.000000e+00> : vector<16x128xf32>
    %44 = tpu.matmul %41, %43, %cst_34 {dimension_numbers = #tpu.dot_dimension_numbers<[1], [0], [0], [1], [0, 0, 1, 1], [], []>} : vector<16x128xf32>, vector<128x128xf32>, vector<16x128xf32> -> vector<16x128xf32>
    %45 = arith.addf %38, %44 : vector<16x128xf32>
    %c2_35 = arith.constant 2 : index
    %c0_36 = arith.constant 0 : index
    %c0_37 = arith.constant 0 : index
    %46 = vector.load %arg6[%c2_35, %c0_36, %c0_37] : memref<6x128x128xf32, #tpu.memory_space<vmem>>, vector<1x128x128xf32>
    %47 = vector.shape_cast %46 : vector<1x128x128xf32> to vector<128x128xf32>
    %cst_38 = arith.constant dense<0.000000e+00> : vector<16x128xf32>
    %48 = tpu.matmul %28, %47, %cst_38 {dimension_numbers = #tpu.dot_dimension_numbers<[1], [0], [0], [1], [0, 0, 1, 1], [], []>} : vector<16x128xf32>, vector<128x128xf32>, vector<16x128xf32> -> vector<16x128xf32>
    %49 = arith.addf %45, %48 : vector<16x128xf32>
    %cst_39 = arith.constant 0.000000e+00 : f32
    %50 = vector.broadcast %cst_39 : f32 to vector<16x128xf32>
    %51 = arith.maximumf %49, %50 : vector<16x128xf32>
    %c0_40 = arith.constant 0 : index
    %c0_41 = arith.constant 0 : index
    %c0_42 = arith.constant 0 : index
    %52 = vector.load %arg8[%c0_40, %c0_41, %c0_42] : memref<2x128x128xf32, #tpu.memory_space<vmem>>, vector<1x128x128xf32>
    %53 = vector.shape_cast %52 : vector<1x128x128xf32> to vector<128x128xf32>
    %cst_43 = arith.constant dense<0.000000e+00> : vector<16x128xf32>
    %54 = tpu.matmul %5, %53, %cst_43 {dimension_numbers = #tpu.dot_dimension_numbers<[1], [0], [0], [1], [0, 0, 1, 1], [], []>} : vector<16x128xf32>, vector<128x128xf32>, vector<16x128xf32> -> vector<16x128xf32>
    %c0_44 = arith.constant 0 : index
    %c0_45 = arith.constant 0 : index
    %c0_46 = arith.constant 0 : index
    %55 = vector.load %arg9[%c0_44, %c0_45, %c0_46] : memref<2x1x128xf32, #tpu.memory_space<vmem>>, vector<1x1x128xf32>
    %56 = vector.shape_cast %55 : vector<1x1x128xf32> to vector<1x128xf32>
    %57 = vector.broadcast %56 : vector<1x128xf32> to vector<16x128xf32>
    %58 = arith.addf %54, %57 : vector<16x128xf32>
    %59 = arith.addf %51, %58 : vector<16x128xf32>
    %cst_47 = arith.constant 0.000000e+00 : f32
    %60 = vector.broadcast %cst_47 : f32 to vector<16x128xf32>
    %61 = arith.maximumf %59, %60 : vector<16x128xf32>
    %c1_48 = arith.constant 1 : index
    %c0_49 = arith.constant 0 : index
    %c0_50 = arith.constant 0 : index
    %62 = vector.load %arg5[%c1_48, %c0_49, %c0_50] : memref<2x1x128xf32, #tpu.memory_space<vmem>>, vector<1x1x128xf32>
    %63 = vector.shape_cast %62 : vector<1x1x128xf32> to vector<1x128xf32>
    %cst_51 = arith.constant 0.000000e+00 : f32
    %64 = vector.broadcast %cst_51 : f32 to vector<4x128xf32>
    %65 = vector.extract_strided_slice %61 {offsets = [0, 0], sizes = [12, 128], strides = [1, 1]} : vector<16x128xf32> to vector<12x128xf32>
    %66 = tpu.concatenate %64, %65 in 0 : vector<4x128xf32>, vector<12x128xf32> -> vector<16x128xf32>
    %c3 = arith.constant 3 : index
    %c0_52 = arith.constant 0 : index
    %c0_53 = arith.constant 0 : index
    %67 = vector.load %arg4[%c3, %c0_52, %c0_53] : memref<6x128x128xf32, #tpu.memory_space<vmem>>, vector<1x128x128xf32>
    %68 = vector.shape_cast %67 : vector<1x128x128xf32> to vector<128x128xf32>
    %cst_54 = arith.constant dense<0.000000e+00> : vector<16x128xf32>
    %69 = tpu.matmul %66, %68, %cst_54 {dimension_numbers = #tpu.dot_dimension_numbers<[1], [0], [0], [1], [0, 0, 1, 1], [], []>} : vector<16x128xf32>, vector<128x128xf32>, vector<16x128xf32> -> vector<16x128xf32>
    %70 = vector.broadcast %63 : vector<1x128xf32> to vector<16x128xf32>
    %71 = arith.addf %70, %69 : vector<16x128xf32>
    %cst_55 = arith.constant 0.000000e+00 : f32
    %72 = vector.broadcast %cst_55 : f32 to vector<2x128xf32>
    %73 = vector.extract_strided_slice %61 {offsets = [0, 0], sizes = [14, 128], strides = [1, 1]} : vector<16x128xf32> to vector<14x128xf32>
    %74 = tpu.concatenate %72, %73 in 0 : vector<2x128xf32>, vector<14x128xf32> -> vector<16x128xf32>
    %c4 = arith.constant 4 : index
    %c0_56 = arith.constant 0 : index
    %c0_57 = arith.constant 0 : index
    %75 = vector.load %arg4[%c4, %c0_56, %c0_57] : memref<6x128x128xf32, #tpu.memory_space<vmem>>, vector<1x128x128xf32>
    %76 = vector.shape_cast %75 : vector<1x128x128xf32> to vector<128x128xf32>
    %cst_58 = arith.constant dense<0.000000e+00> : vector<16x128xf32>
    %77 = tpu.matmul %74, %76, %cst_58 {dimension_numbers = #tpu.dot_dimension_numbers<[1], [0], [0], [1], [0, 0, 1, 1], [], []>} : vector<16x128xf32>, vector<128x128xf32>, vector<16x128xf32> -> vector<16x128xf32>
    %78 = arith.addf %71, %77 : vector<16x128xf32>
    %c5 = arith.constant 5 : index
    %c0_59 = arith.constant 0 : index
    %c0_60 = arith.constant 0 : index
    %79 = vector.load %arg4[%c5, %c0_59, %c0_60] : memref<6x128x128xf32, #tpu.memory_space<vmem>>, vector<1x128x128xf32>
    %80 = vector.shape_cast %79 : vector<1x128x128xf32> to vector<128x128xf32>
    %cst_61 = arith.constant dense<0.000000e+00> : vector<16x128xf32>
    %81 = tpu.matmul %61, %80, %cst_61 {dimension_numbers = #tpu.dot_dimension_numbers<[1], [0], [0], [1], [0, 0, 1, 1], [], []>} : vector<16x128xf32>, vector<128x128xf32>, vector<16x128xf32> -> vector<16x128xf32>
    %82 = arith.addf %78, %81 : vector<16x128xf32>
    %cst_62 = arith.constant 0.000000e+00 : f32
    %83 = vector.broadcast %cst_62 : f32 to vector<16x128xf32>
    %84 = arith.maximumf %82, %83 : vector<16x128xf32>
    %c1_63 = arith.constant 1 : index
    %c0_64 = arith.constant 0 : index
    %c0_65 = arith.constant 0 : index
    %85 = vector.load %arg7[%c1_63, %c0_64, %c0_65] : memref<2x1x128xf32, #tpu.memory_space<vmem>>, vector<1x1x128xf32>
    %86 = vector.shape_cast %85 : vector<1x1x128xf32> to vector<1x128xf32>
    %cst_66 = arith.constant 0.000000e+00 : f32
    %87 = vector.broadcast %cst_66 : f32 to vector<4x128xf32>
    %88 = vector.extract_strided_slice %84 {offsets = [0, 0], sizes = [12, 128], strides = [1, 1]} : vector<16x128xf32> to vector<12x128xf32>
    %89 = tpu.concatenate %87, %88 in 0 : vector<4x128xf32>, vector<12x128xf32> -> vector<16x128xf32>
    %c3_67 = arith.constant 3 : index
    %c0_68 = arith.constant 0 : index
    %c0_69 = arith.constant 0 : index
    %90 = vector.load %arg6[%c3_67, %c0_68, %c0_69] : memref<6x128x128xf32, #tpu.memory_space<vmem>>, vector<1x128x128xf32>
    %91 = vector.shape_cast %90 : vector<1x128x128xf32> to vector<128x128xf32>
    %cst_70 = arith.constant dense<0.000000e+00> : vector<16x128xf32>
    %92 = tpu.matmul %89, %91, %cst_70 {dimension_numbers = #tpu.dot_dimension_numbers<[1], [0], [0], [1], [0, 0, 1, 1], [], []>} : vector<16x128xf32>, vector<128x128xf32>, vector<16x128xf32> -> vector<16x128xf32>
    %93 = vector.broadcast %86 : vector<1x128xf32> to vector<16x128xf32>
    %94 = arith.addf %93, %92 : vector<16x128xf32>
    %cst_71 = arith.constant 0.000000e+00 : f32
    %95 = vector.broadcast %cst_71 : f32 to vector<2x128xf32>
    %96 = vector.extract_strided_slice %84 {offsets = [0, 0], sizes = [14, 128], strides = [1, 1]} : vector<16x128xf32> to vector<14x128xf32>
    %97 = tpu.concatenate %95, %96 in 0 : vector<2x128xf32>, vector<14x128xf32> -> vector<16x128xf32>
    %c4_72 = arith.constant 4 : index
    %c0_73 = arith.constant 0 : index
    %c0_74 = arith.constant 0 : index
    %98 = vector.load %arg6[%c4_72, %c0_73, %c0_74] : memref<6x128x128xf32, #tpu.memory_space<vmem>>, vector<1x128x128xf32>
    %99 = vector.shape_cast %98 : vector<1x128x128xf32> to vector<128x128xf32>
    %cst_75 = arith.constant dense<0.000000e+00> : vector<16x128xf32>
    %100 = tpu.matmul %97, %99, %cst_75 {dimension_numbers = #tpu.dot_dimension_numbers<[1], [0], [0], [1], [0, 0, 1, 1], [], []>} : vector<16x128xf32>, vector<128x128xf32>, vector<16x128xf32> -> vector<16x128xf32>
    %101 = arith.addf %94, %100 : vector<16x128xf32>
    %c5_76 = arith.constant 5 : index
    %c0_77 = arith.constant 0 : index
    %c0_78 = arith.constant 0 : index
    %102 = vector.load %arg6[%c5_76, %c0_77, %c0_78] : memref<6x128x128xf32, #tpu.memory_space<vmem>>, vector<1x128x128xf32>
    %103 = vector.shape_cast %102 : vector<1x128x128xf32> to vector<128x128xf32>
    %cst_79 = arith.constant dense<0.000000e+00> : vector<16x128xf32>
    %104 = tpu.matmul %84, %103, %cst_79 {dimension_numbers = #tpu.dot_dimension_numbers<[1], [0], [0], [1], [0, 0, 1, 1], [], []>} : vector<16x128xf32>, vector<128x128xf32>, vector<16x128xf32> -> vector<16x128xf32>
    %105 = arith.addf %101, %104 : vector<16x128xf32>
    %cst_80 = arith.constant 0.000000e+00 : f32
    %106 = vector.broadcast %cst_80 : f32 to vector<16x128xf32>
    %107 = arith.maximumf %105, %106 : vector<16x128xf32>
    %108 = arith.addf %107, %61 : vector<16x128xf32>
    %cst_81 = arith.constant 0.000000e+00 : f32
    %109 = vector.broadcast %cst_81 : f32 to vector<16x128xf32>
    %110 = arith.maximumf %108, %109 : vector<16x128xf32>
    %111 = tpu.iota {dimensions = array<i32: 1>} : vector<16x128xi32>
    %cst_82 = arith.constant dense<0.000000e+00> : vector<16xf32>
    %112 = vector.multi_reduction <add>, %110, %cst_82 [1] : vector<16x128xf32> to vector<16xf32>
    %113 = vector.shape_cast %112 : vector<16xf32> to vector<16x1xf32>
    %cst_83 = arith.constant 3.125000e-02 : f32
    %114 = vector.broadcast %cst_83 : f32 to vector<16x1xf32>
    %115 = arith.mulf %113, %114 : vector<16x1xf32>
    %c32_i32 = arith.constant 32 : i32
    %116 = vector.broadcast %c32_i32 : i32 to vector<16x128xi32>
    %117 = arith.cmpi slt, %111, %116 : vector<16x128xi32>
    %118 = vector.broadcast %115 : vector<16x1xf32> to vector<16x128xf32>
    %119 = arith.subf %110, %118 : vector<16x128xf32>
    %cst_84 = arith.constant 0.000000e+00 : f32
    %120 = vector.broadcast %cst_84 : f32 to vector<16x128xf32>
    %121 = arith.select %117, %119, %120 : vector<16x128xi1>, vector<16x128xf32>
    %122 = arith.mulf %121, %121 : vector<16x128xf32>
    %cst_85 = arith.constant dense<0.000000e+00> : vector<16xf32>
    %123 = vector.multi_reduction <add>, %122, %cst_85 [1] : vector<16x128xf32> to vector<16xf32>
    %124 = vector.shape_cast %123 : vector<16xf32> to vector<16x1xf32>
    %cst_86 = arith.constant 3.125000e-02 : f32
    %125 = vector.broadcast %cst_86 : f32 to vector<16x1xf32>
    %126 = arith.mulf %124, %125 : vector<16x1xf32>
    %127 = vector.broadcast %115 : vector<16x1xf32> to vector<16x128xf32>
    %128 = arith.subf %110, %127 : vector<16x128xf32>
    %cst_87 = arith.constant 9.99999974E-6 : f32
    %129 = vector.broadcast %cst_87 : f32 to vector<16x1xf32>
    %130 = arith.addf %126, %129 : vector<16x1xf32>
    %131 = math.rsqrt %130 : vector<16x1xf32>
    %132 = vector.broadcast %131 : vector<16x1xf32> to vector<16x128xf32>
    %133 = arith.mulf %128, %132 : vector<16x128xf32>
    %c0_88 = arith.constant 0 : index
    %c0_89 = arith.constant 0 : index
    %134 = vector.load %arg10[%c0_88, %c0_89] : memref<1x128xf32, #tpu.memory_space<vmem>>, vector<1x128xf32>
    %135 = vector.broadcast %134 : vector<1x128xf32> to vector<16x128xf32>
    %136 = arith.mulf %133, %135 : vector<16x128xf32>
    %c0_90 = arith.constant 0 : index
    %c0_91 = arith.constant 0 : index
    %137 = vector.load %arg11[%c0_90, %c0_91] : memref<1x128xf32, #tpu.memory_space<vmem>>, vector<1x128xf32>
    %138 = vector.broadcast %137 : vector<1x128xf32> to vector<16x128xf32>
    %139 = arith.addf %136, %138 : vector<16x128xf32>
    %c0_92 = arith.constant 0 : index
    %c0_93 = arith.constant 0 : index
    %c0_94 = arith.constant 0 : index
    %140 = vector.load %arg12[%c0_92, %c0_93, %c0_94] : memref<1x16x128xf32, #tpu.memory_space<vmem>>, vector<1x16x128xf32>
    %141 = vector.shape_cast %140 : vector<1x16x128xf32> to vector<16x128xf32>
    %142 = vector.shape_cast %139 : vector<16x128xf32> to vector<1x16x128xf32>
    tpu.vector_store %arg12[%c0_92, %c0_93, %c0_94], %142 {strides = array<i32>} : memref<1x16x128xf32, #tpu.memory_space<vmem>>, vector<1x16x128xf32>,
    return
  }
  func.func @transform_0(%arg0: i32) -> (i32, i32, i32) {
    %c0_i32 = arith.constant 0 : i32
    %c0_i32_0 = arith.constant 0 : i32
    %c0_i32_1 = arith.constant 0 : i32
    return %arg0, %c0_i32, %c0_i32_0 : i32, i32, i32
  }
  func.func @transform_1(%arg0: i32) -> (i32, i32) {
    %c0_i32 = arith.constant 0 : i32
    %c0_i32_0 = arith.constant 0 : i32
    %c0_i32_1 = arith.constant 0 : i32
    return %c0_i32, %c0_i32_0 : i32, i32
  }
  func.func @transform_2(%arg0: i32) -> (i32, i32) {
    %c0_i32 = arith.constant 0 : i32
    %c0_i32_0 = arith.constant 0 : i32
    %c0_i32_1 = arith.constant 0 : i32
    return %c0_i32, %c0_i32_0 : i32, i32
  }
  func.func @transform_3(%arg0: i32) -> (i32, i32, i32) {
    %c0_i32 = arith.constant 0 : i32
    %c0_i32_0 = arith.constant 0 : i32
    %c0_i32_1 = arith.constant 0 : i32
    %c0_i32_2 = arith.constant 0 : i32
    return %c0_i32, %c0_i32_0, %c0_i32_1 : i32, i32, i32
  }
  func.func @transform_4(%arg0: i32) -> (i32, i32, i32) {
    %c0_i32 = arith.constant 0 : i32
    %c0_i32_0 = arith.constant 0 : i32
    %c0_i32_1 = arith.constant 0 : i32
    %c0_i32_2 = arith.constant 0 : i32
    return %c0_i32, %c0_i32_0, %c0_i32_1 : i32, i32, i32
  }
  func.func @transform_5(%arg0: i32) -> (i32, i32, i32) {
    %c0_i32 = arith.constant 0 : i32
    %c0_i32_0 = arith.constant 0 : i32
    %c0_i32_1 = arith.constant 0 : i32
    %c0_i32_2 = arith.constant 0 : i32
    return %c0_i32, %c0_i32_0, %c0_i32_1 : i32, i32, i32
  }
  func.func @transform_6(%arg0: i32) -> (i32, i32, i32) {
    %c0_i32 = arith.constant 0 : i32
    %c0_i32_0 = arith.constant 0 : i32
    %c0_i32_1 = arith.constant 0 : i32
    %c0_i32_2 = arith.constant 0 : i32
    return %c0_i32, %c0_i32_0, %c0_i32_1 : i32, i32, i32
  }
  func.func @transform_7(%arg0: i32) -> (i32, i32, i32) {
    %c0_i32 = arith.constant 0 : i32
    %c0_i32_0 = arith.constant 0 : i32
    %c0_i32_1 = arith.constant 0 : i32
    %c0_i32_2 = arith.constant 0 : i32
    return %c0_i32, %c0_i32_0, %c0_i32_1 : i32, i32, i32
  }
  func.func @transform_8(%arg0: i32) -> (i32, i32, i32) {
    %c0_i32 = arith.constant 0 : i32
    %c0_i32_0 = arith.constant 0 : i32
    %c0_i32_1 = arith.constant 0 : i32
    %c0_i32_2 = arith.constant 0 : i32
    return %c0_i32, %c0_i32_0, %c0_i32_1 : i32, i32, i32
  }
  func.func @transform_9(%arg0: i32) -> (i32, i32) {
    %c0_i32 = arith.constant 0 : i32
    %c0_i32_0 = arith.constant 0 : i32
    %c0_i32_1 = arith.constant 0 : i32
    return %c0_i32, %c0_i32_0 : i32, i32
  }
  func.func @transform_10(%arg0: i32) -> (i32, i32) {
    %c0_i32 = arith.constant 0 : i32
    %c0_i32_0 = arith.constant 0 : i32
    %c0_i32_1 = arith.constant 0 : i32
    return %c0_i32, %c0_i32_0 : i32, i32
  }
  func.func @transform_11(%arg0: i32) -> (i32, i32, i32) {
    %c0_i32 = arith.constant 0 : i32
    %c0_i32_0 = arith.constant 0 : i32
    %c0_i32_1 = arith.constant 0 : i32
    return %arg0, %c0_i32, %c0_i32_0 : i32, i32, i32
  }
}

</mosaic_0001>

<llo_original>
// kernel: forward_pallas.1
$region0: #{forward_pallas.1}
  #allocation0 [shape = 'u32[]', space=smem, size = 0x4, offset = 0x4, fixed_abs, tag = 'smem constant byte address 0x4 - core index']
  #allocation1 [shape = 'u32[144,128]{1,0:T(1,128)}', space=vmem, size = 0x12000, scoped, tag = 'internal scratch']
  %s0 = inlined_call_operand.vmem [shape: f32[2,16,128], index: 0, kind: input, shape index: {}]
  %s1 = inlined_call_operand.vmem [shape: f32[128,128], index: 1, kind: input, shape index: {}]
  %s2 = inlined_call_operand.vmem [shape: f32[16,128], index: 2, kind: input, shape index: {}]
  %s3 = inlined_call_operand.vmem [shape: f32[6,128,128], index: 3, kind: input, shape index: {}]
  %s4 = inlined_call_operand.vmem [shape: f32[2,1,128], index: 4, kind: input, shape index: {}]
  %s5 = inlined_call_operand.vmem [shape: f32[6,128,128], index: 5, kind: input, shape index: {}]
  %s6 = inlined_call_operand.vmem [shape: f32[2,1,128], index: 6, kind: input, shape index: {}]
  %s7 = inlined_call_operand.vmem [shape: f32[2,128,128], index: 7, kind: input, shape index: {}]
  %s8 = inlined_call_operand.vmem [shape: f32[2,1,128], index: 8, kind: input, shape index: {}]
  %s9 = inlined_call_operand.vmem [shape: f32[1,128], index: 9, kind: input, shape index: {}]
  %s10 = inlined_call_operand.vmem [shape: f32[1,128], index: 10, kind: input, shape index: {}]
  %s11 = inlined_call_operand.hbm [shape: f32[2,16,128], index: 11, kind: output, shape index: {}]
  %s12 = sld [smem:[#allocation0]]
  $region77: #{forward_pallas.1} parent=0
    _
  %s14 = ssub.s32 1, %s12
  %s15 = scalar_select 0, %s14, %s12
  $region1: #{forward_pallas.1} parent=0
    #allocation2 [shape = 'u8[16384]{0}', space=vmem, size = 0x4000, scoped, tag = 'output window, operand 0']
    #allocation3 [shape = 's32[2]{0}', space=sflag, size = 0x8, scoped, tag = 'scoped memory for forward_pallas.1']
    %16 = vsyncpa [#allocation3], 0
    %s17 = scalar_lea.sflag [#allocation3], 1
    %18 = vsyncpa %s17, 0
    loop: start=0, step=1, limit=4
    $region2: #{forward_pallas.1} parent=1 // loop_pre_header
      _
    $region3: #{forward_pallas.1} parent=1 // loop_header
      %s20 = sphi 0, %s24
      %p21 = scmp.ge.s32.totalorder %s20, 4
      %s30 = sphi 0, %s32
      %s33 = sphi 0, %s30
      %s34 = sphi 0, %s33
      %s50 = sphi 0, %s34
      %s54 = sphi 0, %s54
      %s56 = sphi 0, %s54
      %s57 = sphi 0, %s56
      %s71 = sphi 0, %s57
      %s75 = sphi 0, %s75
      %s77 = sphi 0, %s75
      %s78 = sphi 0, %s77
      %s92 = sphi 0, %s78
      %s96 = sphi 0, %s96
      %s98 = sphi 0, %s96
      %s99 = sphi 0, %s98
      %s113 = sphi 0, %s99
      %s117 = sphi 0, %s117
      %s119 = sphi 0, %s117
      %s120 = sphi 0, %s119
      %s134 = sphi 0, %s120
      %s138 = sphi 0, %s138
      %s140 = sphi 0, %s138
      %s141 = sphi 0, %s140
      %s155 = sphi 0, %s141
      %s159 = sphi 0, %s159
      %s161 = sphi 0, %s159
      %s162 = sphi 0, %s161
      %s176 = sphi 0, %s162
      %s180 = sphi 0, %s180
      %s182 = sphi 0, %s180
      %s183 = sphi 0, %s182
      %s197 = sphi 0, %s183
      %s201 = sphi 0, %s201
      %s203 = sphi 0, %s201
      %s204 = sphi 0, %s203
      %s218 = sphi 0, %s204
      %s222 = sphi 0, %s222
      %s224 = sphi 0, %s222
      %s225 = sphi 0, %s224
      %s239 = sphi 0, %s225
      %s243 = sphi 0, %s243
      %s245 = sphi 0, %s243
      %s246 = sphi 0, %s245
      %s260 = sphi 0, %s246
      %s266 = sphi 0, %s268
      %s269 = sphi 0, %s266
      %s270 = sphi 0, %s269
      %s286 = sphi 0, %s270
    $region4: #{forward_pallas.1} parent=1 // loop_header_branch
      %23 = sbr.rel (%p21) target = $region8
    $region5: #{forward_pallas.1} parent=1 // loop_body
      %s25 = ssub.s32 %s20, 1
      %s26 = ssub.s32 %s20, 2
      %s27 = sadd.s32 %s20, 1
      %s28 = ssub.s32 %s20, %s27
      %p29 = scmp.eq.s32.totalorder %s28, 0
      %s31 = sadd.s32 %s30, 1
      %s32 = scalar_select %p29, %s30, %s31
      %p35 = pneg %p29
      %p36 = scmp.eq.s32.totalorder %s20, 1
      %p37 = por %p35, %p36
      %p38 = scmp.ne.s32.totalorder %s30, %s33
      %p39 = scmp.eq.s32.totalorder %s20, 0
      %p40 = por %p38, %p39
      %p41 = scmp.ne.s32.totalorder %s30, %s33
      %p42 = scmp.eq.s32.totalorder %s25, 1
      %p43 = por %p41, %p42
      %p44 = scmp.ne.s32.totalorder %s33, %s34
      %p45 = scmp.eq.s32.totalorder %s25, 0
      %p46 = por %p44, %p45
      %p47 = scmp.ne.s32.totalorder %s33, %s34
      %p48 = scmp.eq.s32.totalorder %s26, 1
      %p49 = por %p47, %p48
      %p51 = scmp.ne.s32.totalorder %s34, %s50
      %p52 = scmp.eq.s32.totalorder %s26, 0
      %p53 = por %p51, %p52
      %s55 = sadd.s32 %s54, 1
      %p58 = scmp.eq.s32.totalorder %s20, 1
      %p59 = scmp.ne.s32.totalorder %s54, %s56
      %p60 = scmp.eq.s32.totalorder %s20, 0
      %p61 = por %p59, %p60
      %p62 = scmp.ne.s32.totalorder %s54, %s56
      %p63 = scmp.eq.s32.totalorder %s25, 1
      %p64 = por %p62, %p63
      %p65 = scmp.ne.s32.totalorder %s56, %s57
      %p66 = scmp.eq.s32.totalorder %s25, 0
      %p67 = por %p65, %p66
      %p68 = scmp.ne.s32.totalorder %s56, %s57
      %p69 = scmp.eq.s32.totalorder %s26, 1
      %p70 = por %p68, %p69
      %p72 = scmp.ne.s32.totalorder %s57, %s71
      %p73 = scmp.eq.s32.totalorder %s26, 0
      %p74 = por %p72, %p73
      %s76 = sadd.s32 %s75, 1
      %p79 = scmp.eq.s32.totalorder %s20, 1
      %p80 = scmp.ne.s32.totalorder %s75, %s77
      %p81 = scmp.eq.s32.totalorder %s20, 0
      %p82 = por %p80, %p81
      %p83 = scmp.ne.s32.totalorder %s75, %s77
      %p84 = scmp.eq.s32.totalorder %s25, 1
      %p85 = por %p83, %p84
      %p86 = scmp.ne.s32.totalorder %s77, %s78
      %p87 = scmp.eq.s32.totalorder %s25, 0
      %p88 = por %p86, %p87
      %p89 = scmp.ne.s32.totalorder %s77, %s78
      %p90 = scmp.eq.s32.totalorder %s26, 1
      %p91 = por %p89, %p90
      %p93 = scmp.ne.s32.totalorder %s78, %s92
      %p94 = scmp.eq.s32.totalorder %s26, 0
      %p95 = por %p93, %p94
      %s97 = sadd.s32 %s96, 1
      %p100 = scmp.eq.s32.totalorder %s20, 1
      %p101 = scmp.ne.s32.totalorder %s96, %s98
      %p102 = scmp.eq.s32.totalorder %s20, 0
      %p103 = por %p101, %p102
      %p104 = scmp.ne.s32.totalorder %s96, %s98
      %p105 = scmp.eq.s32.totalorder %s25, 1
      %p106 = por %p104, %p105
      %p107 = scmp.ne.s32.totalorder %s98, %s99
      %p108 = scmp.eq.s32.totalorder %s25, 0
      %p109 = por %p107, %p108
      %p110 = scmp.ne.s32.totalorder %s98, %s99
      %p111 = scmp.eq.s32.totalorder %s26, 1
      %p112 = por %p110, %p111
      %p114 = scmp.ne.s32.totalorder %s99, %s113
      %p115 = scmp.eq.s32.totalorder %s26, 0
      %p116 = por %p114, %p115
      %s118 = sadd.s32 %s117, 1
      %p121 = scmp.eq.s32.totalorder %s20, 1
      %p122 = scmp.ne.s32.totalorder %s117, %s119
      %p123 = scmp.eq.s32.totalorder %s20, 0
      %p124 = por %p122, %p123
      %p125 = scmp.ne.s32.totalorder %s117, %s119
      %p126 = scmp.eq.s32.totalorder %s25, 1
      %p127 = por %p125, %p126
      %p128 = scmp.ne.s32.totalorder %s119, %s120
      %p129 = scmp.eq.s32.totalorder %s25, 0
      %p130 = por %p128, %p129
      %p131 = scmp.ne.s32.totalorder %s119, %s120
      %p132 = scmp.eq.s32.totalorder %s26, 1
      %p133 = por %p131, %p132
      %p135 = scmp.ne.s32.totalorder %s120, %s134
      %p136 = scmp.eq.s32.totalorder %s26, 0
      %p137 = por %p135, %p136
      %s139 = sadd.s32 %s138, 1
      %p142 = scmp.eq.s32.totalorder %s20, 1
      %p143 = scmp.ne.s32.totalorder %s138, %s140
      %p144 = scmp.eq.s32.totalorder %s20, 0
      %p145 = por %p143, %p144
      %p146 = scmp.ne.s32.totalorder %s138, %s140
      %p147 = scmp.eq.s32.totalorder %s25, 1
      %p148 = por %p146, %p147
      %p149 = scmp.ne.s32.totalorder %s140, %s141
      %p150 = scmp.eq.s32.totalorder %s25, 0
      %p151 = por %p149, %p150
      %p152 = scmp.ne.s32.totalorder %s140, %s141
      %p153 = scmp.eq.s32.totalorder %s26, 1
      %p154 = por %p152, %p153
      %p156 = scmp.ne.s32.totalorder %s141, %s155
      %p157 = scmp.eq.s32.totalorder %s26, 0
      %p158 = por %p156, %p157
      %s160 = sadd.s32 %s159, 1
      %p163 = scmp.eq.s32.totalorder %s20, 1
      %p164 = scmp.ne.s32.totalorder %s159, %s161
      %p165 = scmp.eq.s32.totalorder %s20, 0
      %p166 = por %p164, %p165
      %p167 = scmp.ne.s32.totalorder %s159, %s161
      %p168 = scmp.eq.s32.totalorder %s25, 1
      %p169 = por %p167, %p168
      %p170 = scmp.ne.s32.totalorder %s161, %s162
      %p171 = scmp.eq.s32.totalorder %s25, 0
      %p172 = por %p170, %p171
      %p173 = scmp.ne.s32.totalorder %s161, %s162
      %p174 = scmp.eq.s32.totalorder %s26, 1
      %p175 = por %p173, %p174
      %p177 = scmp.ne.s32.totalorder %s162, %s176
      %p178 = scmp.eq.s32.totalorder %s26, 0
      %p179 = por %p177, %p178
      %s181 = sadd.s32 %s180, 1
      %p184 = scmp.eq.s32.totalorder %s20, 1
      %p185 = scmp.ne.s32.totalorder %s180, %s182
      %p186 = scmp.eq.s32.totalorder %s20, 0
      %p187 = por %p185, %p186
      %p188 = scmp.ne.s32.totalorder %s180, %s182
      %p189 = scmp.eq.s32.totalorder %s25, 1
      %p190 = por %p188, %p189
      %p191 = scmp.ne.s32.totalorder %s182, %s183
      %p192 = scmp.eq.s32.totalorder %s25, 0
      %p193 = por %p191, %p192
      %p194 = scmp.ne.s32.totalorder %s182, %s183
      %p195 = scmp.eq.s32.totalorder %s26, 1
      %p196 = por %p194, %p195
      %p198 = scmp.ne.s32.totalorder %s183, %s197
      %p199 = scmp.eq.s32.totalorder %s26, 0
      %p200 = por %p198, %p199
      %s202 = sadd.s32 %s201, 1
      %p205 = scmp.eq.s32.totalorder %s20, 1
      %p206 = scmp.ne.s32.totalorder %s201, %s203
      %p207 = scmp.eq.s32.totalorder %s20, 0
      %p208 = por %p206, %p207
      %p209 = scmp.ne.s32.totalorder %s201, %s203
      %p210 = scmp.eq.s32.totalorder %s25, 1
      %p211 = por %p209, %p210
      %p212 = scmp.ne.s32.totalorder %s203, %s204
      %p213 = scmp.eq.s32.totalorder %s25, 0
      %p214 = por %p212, %p213
      %p215 = scmp.ne.s32.totalorder %s203, %s204
      %p216 = scmp.eq.s32.totalorder %s26, 1
      %p217 = por %p215, %p216
      %p219 = scmp.ne.s32.totalorder %s204, %s218
      %p220 = scmp.eq.s32.totalorder %s26, 0
      %p221 = por %p219, %p220
      %s223 = sadd.s32 %s222, 1
      %p226 = scmp.eq.s32.totalorder %s20, 1
      %p227 = scmp.ne.s32.totalorder %s222, %s224
      %p228 = scmp.eq.s32.totalorder %s20, 0
      %p229 = por %p227, %p228
      %p230 = scmp.ne.s32.totalorder %s222, %s224
      %p231 = scmp.eq.s32.totalorder %s25, 1
      %p232 = por %p230, %p231
      %p233 = scmp.ne.s32.totalorder %s224, %s225
      %p234 = scmp.eq.s32.totalorder %s25, 0
      %p235 = por %p233, %p234
      %p236 = scmp.ne.s32.totalorder %s224, %s225
      %p237 = scmp.eq.s32.totalorder %s26, 1
      %p238 = por %p236, %p237
      %p240 = scmp.ne.s32.totalorder %s225, %s239
      %p241 = scmp.eq.s32.totalorder %s26, 0
      %p242 = por %p240, %p241
      %s244 = sadd.s32 %s243, 1
      %p247 = scmp.eq.s32.totalorder %s20, 1
      %p248 = scmp.ne.s32.totalorder %s243, %s245
      %p249 = scmp.eq.s32.totalorder %s20, 0
      %p250 = por %p248, %p249
      %p251 = scmp.ne.s32.totalorder %s243, %s245
      %p252 = scmp.eq.s32.totalorder %s25, 1
      %p253 = por %p251, %p252
      %p254 = scmp.ne.s32.totalorder %s245, %s246
      %p255 = scmp.eq.s32.totalorder %s25, 0
      %p256 = por %p254, %p255
      %p257 = scmp.ne.s32.totalorder %s245, %s246
      %p258 = scmp.eq.s32.totalorder %s26, 1
      %p259 = por %p257, %p258
      %p261 = scmp.ne.s32.totalorder %s246, %s260
      %p262 = scmp.eq.s32.totalorder %s26, 0
      %p263 = por %p261, %p262
      %s264 = ssub.s32 %s20, %s27
      %p265 = scmp.eq.s32.totalorder %s264, 0
      %s267 = sadd.s32 %s266, 1
      %s268 = scalar_select %p265, %s266, %s267
      %p271 = pneg %p265
      %p272 = scmp.eq.s32.totalorder %s20, 1
      %p273 = por %p271, %p272
      %p274 = scmp.ne.s32.totalorder %s266, %s269
      %p275 = scmp.eq.s32.totalorder %s20, 0
      %p276 = por %p274, %p275
      %p277 = scmp.ne.s32.totalorder %s266, %s269
      %p278 = scmp.eq.s32.totalorder %s25, 1
      %p279 = por %p277, %p278
      %p280 = scmp.ne.s32.totalorder %s269, %s270
      %p281 = scmp.eq.s32.totalorder %s25, 0
      %p282 = por %p280, %p281
      %p283 = scmp.ne.s32.totalorder %s269, %s270
      %p284 = scmp.eq.s32.totalorder %s26, 1
      %p285 = por %p283, %p284
      %p287 = scmp.ne.s32.totalorder %s270, %s286
      %p288 = scmp.eq.s32.totalorder %s26, 0
      %p289 = por %p287, %p288
      %p290 = scmp.le.s32.totalorder 1, %s20
      %p291 = scmp.lt.s32.totalorder %s20, 3
      %p292 = pnand %p290, %p291
      %p293 = pneg %p292
      // Predicated region
      $region9: #{forward_pallas.1} parent=5 // pred_check
        _
      $region10: #{forward_pallas.1} parent=5 // pred_check_branch
        %295 = sbr.rel (%p292) target = $region12
      $region11: #{forward_pallas.1} parent=5 // pred_region
        %s296 = ssub.s32 %s20, 1
        // Predicated region
        $region13: #{forward_pallas.1} parent=11 // pred_check
          %p297 = pneg %p67
        $region14: #{forward_pallas.1} parent=11 // pred_check_branch
          %299 = sbr.rel (%p297) target = $region16
        $region15: #{forward_pallas.1} parent=11 // pred_region
          _
        $region16: #{forward_pallas.1} parent=11 // pred_fallthru
          _
        // Predicated region
        $region17: #{forward_pallas.1} parent=11 // pred_check
          %p300 = pneg %p88
        $region18: #{forward_pallas.1} parent=11 // pred_check_branch
          %302 = sbr.rel (%p300) target = $region20
        $region19: #{forward_pallas.1} parent=11 // pred_region
          _
        $region20: #{forward_pallas.1} parent=11 // pred_fallthru
          _
        // Predicated region
        $region21: #{forward_pallas.1} parent=11 // pred_check
          %p303 = pneg %p109
        $region22: #{forward_pallas.1} parent=11 // pred_check_branch
          %305 = sbr.rel (%p303) target = $region24
        $region23: #{forward_pallas.1} parent=11 // pred_region
          _
        $region24: #{forward_pallas.1} parent=11 // pred_fallthru
          _
        // Predicated region
        $region25: #{forward_pallas.1} parent=11 // pred_check
          %p306 = pneg %p130
        $region26: #{forward_pallas.1} parent=11 // pred_check_branch
          %308 = sbr.rel (%p306) target = $region28
        $region27: #{forward_pallas.1} parent=11 // pred_region
          _
        $region28: #{forward_pallas.1} parent=11 // pred_fallthru
          _
        // Predicated region
        $region29: #{forward_pallas.1} parent=11 // pred_check
          %p309 = pneg %p151
        $region30: #{forward_pallas.1} parent=11 // pred_check_branch
          %311 = sbr.rel (%p309) target = $region32
        $region31: #{forward_pallas.1} parent=11 // pred_region
          _
        $region32: #{forward_pallas.1} parent=11 // pred_fallthru
          _
        // Predicated region
        $region33: #{forward_pallas.1} parent=11 // pred_check
          %p312 = pneg %p172
        $region34: #{forward_pallas.1} parent=11 // pred_check_branch
          %314 = sbr.rel (%p312) target = $region36
        $region35: #{forward_pallas.1} parent=11 // pred_region
          _
        $region36: #{forward_pallas.1} parent=11 // pred_fallthru
          _
        // Predicated region
        $region37: #{forward_pallas.1} parent=11 // pred_check
          %p315 = pneg %p193
        $region38: #{forward_pallas.1} parent=11 // pred_check_branch
          %317 = sbr.rel (%p315) target = $region40
        $region39: #{forward_pallas.1} parent=11 // pred_region
          _
        $region40: #{forward_pallas.1} parent=11 // pred_fallthru
          _
        // Predicated region
        $region41: #{forward_pallas.1} parent=11 // pred_check
          %p318 = pneg %p214
        $region42: #{forward_pallas.1} parent=11 // pred_check_branch
          %320 = sbr.rel (%p318) target = $region44
        $region43: #{forward_pallas.1} parent=11 // pred_region
          _
        $region44: #{forward_pallas.1} parent=11 // pred_fallthru
          _
        // Predicated region
        $region45: #{forward_pallas.1} parent=11 // pred_check
          %p321 = pneg %p235
        $region46: #{forward_pallas.1} parent=11 // pred_check_branch
          %323 = sbr.rel (%p321) target = $region48
        $region47: #{forward_pallas.1} parent=11 // pred_region
          _
        $region48: #{forward_pallas.1} parent=11 // pred_fallthru
          _
        // Predicated region
        $region49: #{forward_pallas.1} parent=11 // pred_check
          %p324 = pneg %p256
        $region50: #{forward_pallas.1} parent=11 // pred_check_branch
          %326 = sbr.rel (%p324) target = $region52
        $region51: #{forward_pallas.1} parent=11 // pred_region
          _
        $region52: #{forward_pallas.1} parent=11 // pred_fallthru
          _
      $region12: #{forward_pallas.1} parent=5 // pred_fallthru
        _
      %p327 = scmp.lt.s32.totalorder %s20, 2
      // Predicated region
      $region53: #{forward_pallas.1} parent=5 // pred_check
        %p328 = pneg %p327
      $region54: #{forward_pallas.1} parent=5 // pred_check_branch
        %330 = sbr.rel (%p328) target = $region56
      $region55: #{forward_pallas.1} parent=5 // pred_region
        // Predicated region
        $region57: #{forward_pallas.1} parent=55 // pred_check
          %p331 = pneg %p40
        $region58: #{forward_pallas.1} parent=55 // pred_check_branch
          %333 = sbr.rel (%p331) target = $region60
        $region59: #{forward_pallas.1} parent=55 // pred_region
          %p334 = scmp.lt.s32.totalorder %s20, 1
          %s335 = scalar_select %p334, %s20, 1
          %s336 = smul.addr %s335, 2
          %s337 = smul.addr %s336, 8
          %s338 = scalar_lea.vmem %s0, %s337
        $region60: #{forward_pallas.1} parent=55 // pred_fallthru
          _
      $region56: #{forward_pallas.1} parent=5 // pred_fallthru
        _
      %p339 = scmp.le.s32.totalorder 1, %s20
      %p340 = scmp.lt.s32.totalorder %s20, 3
      %p341 = pnand %p339, %p340
      %p342 = pneg %p341
      // Predicated region
      $region61: #{forward_pallas.1} parent=5 // pred_check
        _
      $region62: #{forward_pallas.1} parent=5 // pred_check_branch
        %344 = sbr.rel (%p341) target = $region64
      $region63: #{forward_pallas.1} parent=5 // pred_region
        %s345 = ssub.s32 %s20, 1
        %p346 = scmp.lt.s32.totalorder %s25, 1
        %s347 = scalar_select %p346, %s25, 1
        %s348 = smul.addr %s347, 2
        %s349 = smul.addr %s348, 8
        %s350 = scalar_lea.vmem %s0, %s349
        %p351 = pneg %p46
        %p352 = pneg %p43
        %p353 = pneg %p67
        %p354 = pneg %p64
        %p355 = pneg %p88
        %p356 = pneg %p85
        %p357 = pneg %p109
        %p358 = pneg %p106
        %p359 = pneg %p130
        %p360 = pneg %p127
        %p361 = pneg %p151
        %p362 = pneg %p148
        %p363 = pneg %p172
        %p364 = pneg %p169
        %p365 = pneg %p193
        %p366 = pneg %p190
        %p367 = pneg %p214
        %p368 = pneg %p211
        %p369 = pneg %p235
        %p370 = pneg %p232
        %p371 = pneg %p256
        %p372 = pneg %p253
        %p373 = pneg %p282
        %p374 = pneg %p279
        %s375 = sand.u32 %s269, 1
        %s376 = scalar_lea.sflag [#allocation3], %s375
        %s377 = sand.u32 %s269, 1
        %s378 = smul.addr %s377, 16
        %s379 = scalar_lea.vmem [#allocation2], %s378
        %p380 = scmp.lt.s32.totalorder %s25, 1
        %s381 = scalar_select %p380, %s25, 1
        %s382 = smul.addr %s381, 2
        %s383 = smul.addr %s382, 8
        %s384 = scalar_lea.vmem %s0, %s383
        %v385 = vld [vmem:[%s384] sm:$0xff]
        %v386 = vld [vmem:[%s384 + $0x8] sm:$0xff]
        %v387 = vld [vmem:[%s1] sm:$0xff]
        %v388 = vld [vmem:[%s1 + $0x8] sm:$0xff]
        %v389 = vld [vmem:[%s1 + $0x10] sm:$0xff]
        %v390 = vld [vmem:[%s1 + $0x18] sm:$0xff]
        %v391 = vld [vmem:[%s1 + $0x20] sm:$0xff]
        %v392 = vld [vmem:[%s1 + $0x28] sm:$0xff]
        %v393 = vld [vmem:[%s1 + $0x30] sm:$0xff]
        %v394 = vld [vmem:[%s1 + $0x38] sm:$0xff]
        %v395 = vld [vmem:[%s1 + $0x40] sm:$0xff]
        %v396 = vld [vmem:[%s1 + $0x48] sm:$0xff]
        %v397 = vld [vmem:[%s1 + $0x50] sm:$0xff]
        %v398 = vld [vmem:[%s1 + $0x58] sm:$0xff]
        %v399 = vld [vmem:[%s1 + $0x60] sm:$0xff]
        %v400 = vld [vmem:[%s1 + $0x68] sm:$0xff]
        %v401 = vld [vmem:[%s1 + $0x70] sm:$0xff]
        %v402 = vld [vmem:[%s1 + $0x78] sm:$0xff]
        %v403 = vld [vmem:[%s2] sm:$0xff]
        %v404 = vld [vmem:[%s2 + $0x8] sm:$0xff]
        %405 = vmatprep.subr.mxu0 0.0
        %406 = vmatpush1.msra.mxu0 %v387
        %407 = vmatprep.subr.mxu0 0.0
        %408 = vmatpush1.msra.mxu0 %v388
        %409 = vmatprep.subr.mxu0 0.0
        %410 = vmatpush1.msra.mxu0 %v389
        %411 = vmatprep.subr.mxu0 0.0
        %412 = vmatpush1.msra.mxu0 %v390
        %413 = vmatprep.subr.mxu0 0.0
        %414 = vmatpush1.msra.mxu0 %v391
        %415 = vmatprep.subr.mxu0 0.0
        %416 = vmatpush1.msra.mxu0 %v392
        %417 = vmatprep.subr.mxu0 0.0
        %418 = vmatpush1.msra.mxu0 %v393
        %419 = vmatprep.subr.mxu0 0.0
        %420 = vmatpush1.msra.mxu0 %v394
        %421 = vmatprep.subr.mxu0 0.0
        %422 = vmatpush1.msra.mxu0 %v395
        %423 = vmatprep.subr.mxu0 0.0
        %424 = vmatpush1.msra.mxu0 %v396
        %425 = vmatprep.subr.mxu0 0.0
        %426 = vmatpush1.msra.mxu0 %v397
        %427 = vmatprep.subr.mxu0 0.0
        %428 = vmatpush1.msra.mxu0 %v398
        %429 = vmatprep.subr.mxu0 0.0
        %430 = vmatpush1.msra.mxu0 %v399
        %431 = vmatprep.subr.mxu0 0.0
        %432 = vmatpush1.msra.mxu0 %v400
        %433 = vmatprep.subr.mxu0 0.0
        %434 = vmatpush1.msra.mxu0 %v401
        %435 = vmatprep.subr.mxu0 0.0
        %436 = vmatpush1.msra.mxu0 %v402
        %437 = vmatprep.subr.mxu0 0.0
        %438 = vmatpush1.msra.mxu0 0.0
        %439 = vmatprep.subr.mxu0 0.0
        %440 = vmatpush1.msra.mxu0 0.0
        %441 = vmatprep.subr.mxu0 0.0
        %442 = vmatpush1.msra.mxu0 0.0
        %443 = vmatprep.subr.mxu0 0.0
        %444 = vmatpush1.msra.mxu0 0.0
        %445 = vmatprep.subr.mxu0 0.0
        %446 = vmatpush1.msra.mxu0 0.0
        %447 = vmatprep.subr.mxu0 0.0
        %448 = vmatpush1.msra.mxu0 0.0
        %449 = vmatprep.subr.mxu0 0.0
        %450 = vmatpush1.msra.mxu0 0.0
        %451 = vmatprep.subr.mxu0 0.0
        %452 = vmatpush1.msra.mxu0 0.0
        %453 = vmatprep.subr.mxu0 0.0
        %454 = vmatpush1.msra.mxu0 0.0
        %455 = vmatprep.subr.mxu0 0.0
        %456 = vmatpush1.msra.mxu0 0.0
        %457 = vmatprep.subr.mxu0 0.0
        %458 = vmatpush1.msra.mxu0 0.0
        %459 = vmatprep.subr.mxu0 0.0
        %460 = vmatpush1.msra.mxu0 0.0
        %461 = vmatprep.subr.mxu0 0.0
        %462 = vmatpush1.msra.mxu0 0.0
        %463 = vmatprep.subr.mxu0 0.0
        %464 = vmatpush1.msra.mxu0 0.0
        %465 = vmatprep.subr.mxu0 0.0
        %466 = vmatpush1.msra.mxu0 0.0
        %467 = vmatprep.subr.mxu0 0.0
        %468 = vmatpush1.msra.mxu0 0.0
        %469 = vmatprep.mubr.f32.mxu0 0.0
        %470 = vmatmul.mubr.f32.gmra.mrb[0].mxu0 %v385
        %v471 = vpop.f32.mrb[0].mxu0
        %v472 = vadd.f32 %v403, %v471
        %v473 = vpop.f32.mrb[0].mxu0
        %474 = vmatprep.mubr.f32.mxu0 0.0
        %475 = vmatmul.mubr.f32.gmra.mrb[0].mxu0 %v386
        %v476 = vpop.f32.mrb[0].mxu0
        %v477 = vadd.f32 %v404, %v476
        %v478 = vpop.f32.mrb[0].mxu0
        %479 = vdwg.mxu0
        %v480 = vld [vmem:[%s4] sm:$0x1]
        %vm483 = vcmask 1041408
        %v484 = vrot.slane %v472, 6
        %v485 = vrot.slane %v477, 6
        %v486 = vsel %vm483, %v484, %v485
        %v489 = vsel %vm483, 0.0, %v484
        %v490 = vld [vmem:[%s3] sm:$0xff]
        %v491 = vld [vmem:[%s3 + $0x8] sm:$0xff]
        %v492 = vld [vmem:[%s3 + $0x10] sm:$0xff]
        %v493 = vld [vmem:[%s3 + $0x18] sm:$0xff]
        %v494 = vld [vmem:[%s3 + $0x20] sm:$0xff]
        %v495 = vld [vmem:[%s3 + $0x28] sm:$0xff]
        %v496 = vld [vmem:[%s3 + $0x30] sm:$0xff]
        %v497 = vld [vmem:[%s3 + $0x38] sm:$0xff]
        %v498 = vld [vmem:[%s3 + $0x40] sm:$0xff]
        %v499 = vld [vmem:[%s3 + $0x48] sm:$0xff]
        %v500 = vld [vmem:[%s3 + $0x50] sm:$0xff]
        %v501 = vld [vmem:[%s3 + $0x58] sm:$0xff]
        %v502 = vld [vmem:[%s3 + $0x60] sm:$0xff]
        %v503 = vld [vmem:[%s3 + $0x68] sm:$0xff]
        %v504 = vld [vmem:[%s3 + $0x70] sm:$0xff]
        %v505 = vld [vmem:[%s3 + $0x78] sm:$0xff]
        %506 = vmatprep.subr.mxu0 0.0
        %507 = vmatpush1.msra.mxu0 %v490
        %508 = vmatprep.subr.mxu0 0.0
        %509 = vmatpush1.msra.mxu0 %v491
        %510 = vmatprep.subr.mxu0 0.0
        %511 = vmatpush1.msra.mxu0 %v492
        %512 = vmatprep.subr.mxu0 0.0
        %513 = vmatpush1.msra.mxu0 %v493
        %514 = vmatprep.subr.mxu0 0.0
        %515 = vmatpush1.msra.mxu0 %v494
        %516 = vmatprep.subr.mxu0 0.0
        %517 = vmatpush1.msra.mxu0 %v495
        %518 = vmatprep.subr.mxu0 0.0
        %519 = vmatpush1.msra.mxu0 %v496
        %520 = vmatprep.subr.mxu0 0.0
        %521 = vmatpush1.msra.mxu0 %v497
        %522 = vmatprep.subr.mxu0 0.0
        %523 = vmatpush1.msra.mxu0 %v498
        %524 = vmatprep.subr.mxu0 0.0
        %525 = vmatpush1.msra.mxu0 %v499
        %526 = vmatprep.subr.mxu0 0.0
        %527 = vmatpush1.msra.mxu0 %v500
        %528 = vmatprep.subr.mxu0 0.0
        %529 = vmatpush1.msra.mxu0 %v501
        %530 = vmatprep.subr.mxu0 0.0
        %531 = vmatpush1.msra.mxu0 %v502
        %532 = vmatprep.subr.mxu0 0.0
        %533 = vmatpush1.msra.mxu0 %v503
        %534 = vmatprep.subr.mxu0 0.0
        %535 = vmatpush1.msra.mxu0 %v504
        %536 = vmatprep.subr.mxu0 0.0
        %537 = vmatpush1.msra.mxu0 %v505
        %538 = vmatprep.subr.mxu0 0.0
        %539 = vmatpush1.msra.mxu0 0.0
        %540 = vmatprep.subr.mxu0 0.0
        %541 = vmatpush1.msra.mxu0 0.0
        %542 = vmatprep.subr.mxu0 0.0
        %543 = vmatpush1.msra.mxu0 0.0
        %544 = vmatprep.subr.mxu0 0.0
        %545 = vmatpush1.msra.mxu0 0.0
        %546 = vmatprep.subr.mxu0 0.0
        %547 = vmatpush1.msra.mxu0 0.0
        %548 = vmatprep.subr.mxu0 0.0
        %549 = vmatpush1.msra.mxu0 0.0
        %550 = vmatprep.subr.mxu0 0.0
        %551 = vmatpush1.msra.mxu0 0.0
        %552 = vmatprep.subr.mxu0 0.0
        %553 = vmatpush1.msra.mxu0 0.0
        %554 = vmatprep.subr.mxu0 0.0
        %555 = vmatpush1.msra.mxu0 0.0
        %556 = vmatprep.subr.mxu0 0.0
        %557 = vmatpush1.msra.mxu0 0.0
        %558 = vmatprep.subr.mxu0 0.0
        %559 = vmatpush1.msra.mxu0 0.0
        %560 = vmatprep.subr.mxu0 0.0
        %561 = vmatpush1.msra.mxu0 0.0
        %562 = vmatprep.subr.mxu0 0.0
        %563 = vmatpush1.msra.mxu0 0.0
        %564 = vmatprep.subr.mxu0 0.0
        %565 = vmatpush1.msra.mxu0 0.0
        %566 = vmatprep.subr.mxu0 0.0
        %567 = vmatpush1.msra.mxu0 0.0
        %568 = vmatprep.subr.mxu0 0.0
        %569 = vmatpush1.msra.mxu0 0.0
        %570 = vmatprep.mubr.f32.mxu0 0.0
        %571 = vmatmul.mubr.f32.gmra.mrb[0].mxu0 %v489
        %v572 = vpop.f32.mrb[0].mxu0
        %v573 = vadd.f32 0.0, %v572
        %v574 = vpop.f32.mrb[0].mxu0
        %575 = vmatprep.mubr.f32.mxu0 0.0
        %576 = vmatmul.mubr.f32.gmra.mrb[0].mxu0 %v486
        %v577 = vpop.f32.mrb[0].mxu0
        %v578 = vadd.f32 0.0, %v577
        %v579 = vpop.f32.mrb[0].mxu0
        %580 = vdwg.mxu0
        %v582 = vlaneseq
        %v583 = vshrl.u32 %v582, 7
        %v584 = vsub.s32 0, %v583
        %v585 = vrot.slane %v480, %v584
        %v587 = vadd.f32 %v585, %v573
        %v588 = vadd.f32 %v585, %v578
        %vm589 = vcmask 1040384
        %v590 = vrot.slane %v472, 7
        %v591 = vrot.slane %v477, 7
        %v592 = vsel %vm589, %v590, %v591
        %v595 = vsel %vm589, 0.0, %v590
        %s596 = scalar_lea.vmem %s3, 128
        %v597 = vld [vmem:[%s596] sm:$0xff]
        %v598 = vld [vmem:[%s596 + $0x8] sm:$0xff]
        %v599 = vld [vmem:[%s596 + $0x10] sm:$0xff]
        %v600 = vld [vmem:[%s596 + $0x18] sm:$0xff]
        %v601 = vld [vmem:[%s596 + $0x20] sm:$0xff]
        %v602 = vld [vmem:[%s596 + $0x28] sm:$0xff]
        %v603 = vld [vmem:[%s596 + $0x30] sm:$0xff]
        %v604 = vld [vmem:[%s596 + $0x38] sm:$0xff]
        %v605 = vld [vmem:[%s596 + $0x40] sm:$0xff]
        %v606 = vld [vmem:[%s596 + $0x48] sm:$0xff]
        %v607 = vld [vmem:[%s596 + $0x50] sm:$0xff]
        %v608 = vld [vmem:[%s596 + $0x58] sm:$0xff]
        %v609 = vld [vmem:[%s596 + $0x60] sm:$0xff]
        %v610 = vld [vmem:[%s596 + $0x68] sm:$0xff]
        %v611 = vld [vmem:[%s596 + $0x70] sm:$0xff]
        %v612 = vld [vmem:[%s596 + $0x78] sm:$0xff]
        %613 = vmatprep.subr.mxu0 0.0
        %614 = vmatpush1.msra.mxu0 %v597
        %615 = vmatprep.subr.mxu0 0.0
        %616 = vmatpush1.msra.mxu0 %v598
        %617 = vmatprep.subr.mxu0 0.0
        %618 = vmatpush1.msra.mxu0 %v599
        %619 = vmatprep.subr.mxu0 0.0
        %620 = vmatpush1.msra.mxu0 %v600
        %621 = vmatprep.subr.mxu0 0.0
        %622 = vmatpush1.msra.mxu0 %v601
        %623 = vmatprep.subr.mxu0 0.0
        %624 = vmatpush1.msra.mxu0 %v602
        %625 = vmatprep.subr.mxu0 0.0
        %626 = vmatpush1.msra.mxu0 %v603
        %627 = vmatprep.subr.mxu0 0.0
        %628 = vmatpush1.msra.mxu0 %v604
        %629 = vmatprep.subr.mxu0 0.0
        %630 = vmatpush1.msra.mxu0 %v605
        %631 = vmatprep.subr.mxu0 0.0
        %632 = vmatpush1.msra.mxu0 %v606
        %633 = vmatprep.subr.mxu0 0.0
        %634 = vmatpush1.msra.mxu0 %v607
        %635 = vmatprep.subr.mxu0 0.0
        %636 = vmatpush1.msra.mxu0 %v608
        %637 = vmatprep.subr.mxu0 0.0
        %638 = vmatpush1.msra.mxu0 %v609
        %639 = vmatprep.subr.mxu0 0.0
        %640 = vmatpush1.msra.mxu0 %v610
        %641 = vmatprep.subr.mxu0 0.0
        %642 = vmatpush1.msra.mxu0 %v611
        %643 = vmatprep.subr.mxu0 0.0
        %644 = vmatpush1.msra.mxu0 %v612
        %645 = vmatprep.subr.mxu0 0.0
        %646 = vmatpush1.msra.mxu0 0.0
        %647 = vmatprep.subr.mxu0 0.0
        %648 = vmatpush1.msra.mxu0 0.0
        %649 = vmatprep.subr.mxu0 0.0
        %650 = vmatpush1.msra.mxu0 0.0
        %651 = vmatprep.subr.mxu0 0.0
        %652 = vmatpush1.msra.mxu0 0.0
        %653 = vmatprep.subr.mxu0 0.0
        %654 = vmatpush1.msra.mxu0 0.0
        %655 = vmatprep.subr.mxu0 0.0
        %656 = vmatpush1.msra.mxu0 0.0
        %657 = vmatprep.subr.mxu0 0.0
        %658 = vmatpush1.msra.mxu0 0.0
        %659 = vmatprep.subr.mxu0 0.0
        %660 = vmatpush1.msra.mxu0 0.0
        %661 = vmatprep.subr.mxu0 0.0
        %662 = vmatpush1.msra.mxu0 0.0
        %663 = vmatprep.subr.mxu0 0.0
        %664 = vmatpush1.msra.mxu0 0.0
        %665 = vmatprep.subr.mxu0 0.0
        %666 = vmatpush1.msra.mxu0 0.0
        %667 = vmatprep.subr.mxu0 0.0
        %668 = vmatpush1.msra.mxu0 0.0
        %669 = vmatprep.subr.mxu0 0.0
        %670 = vmatpush1.msra.mxu0 0.0
        %671 = vmatprep.subr.mxu0 0.0
        %672 = vmatpush1.msra.mxu0 0.0
        %673 = vmatprep.subr.mxu0 0.0
        %674 = vmatpush1.msra.mxu0 0.0
        %675 = vmatprep.subr.mxu0 0.0
        %676 = vmatpush1.msra.mxu0 0.0
        %677 = vmatprep.mubr.f32.mxu0 0.0
        %678 = vmatmul.mubr.f32.gmra.mrb[0].mxu0 %v595
        %v679 = vpop.f32.mrb[0].mxu0
        %v680 = vadd.f32 0.0, %v679
        %v681 = vpop.f32.mrb[0].mxu0
        %682 = vmatprep.mubr.f32.mxu0 0.0
        %683 = vmatmul.mubr.f32.gmra.mrb[0].mxu0 %v592
        %v684 = vpop.f32.mrb[0].mxu0
        %v685 = vadd.f32 0.0, %v684
        %v686 = vpop.f32.mrb[0].mxu0
        %687 = vdwg.mxu0
        %v688 = vadd.f32 %v587, %v680
        %v689 = vadd.f32 %v588, %v685
        %s690 = scalar_lea.vmem %s3, 256
        %v691 = vld [vmem:[%s690] sm:$0xff]
        %v692 = vld [vmem:[%s690 + $0x8] sm:$0xff]
        %v693 = vld [vmem:[%s690 + $0x10] sm:$0xff]
        %v694 = vld [vmem:[%s690 + $0x18] sm:$0xff]
        %v695 = vld [vmem:[%s690 + $0x20] sm:$0xff]
        %v696 = vld [vmem:[%s690 + $0x28] sm:$0xff]
        %v697 = vld [vmem:[%s690 + $0x30] sm:$0xff]
        %v698 = vld [vmem:[%s690 + $0x38] sm:$0xff]
        %v699 = vld [vmem:[%s690 + $0x40] sm:$0xff]
        %v700 = vld [vmem:[%s690 + $0x48] sm:$0xff]
        %v701 = vld [vmem:[%s690 + $0x50] sm:$0xff]
        %v702 = vld [vmem:[%s690 + $0x58] sm:$0xff]
        %v703 = vld [vmem:[%s690 + $0x60] sm:$0xff]
        %v704 = vld [vmem:[%s690 + $0x68] sm:$0xff]
        %v705 = vld [vmem:[%s690 + $0x70] sm:$0xff]
        %v706 = vld [vmem:[%s690 + $0x78] sm:$0xff]
        %707 = vmatprep.subr.mxu0 0.0
        %708 = vmatpush1.msra.mxu0 %v691
        %709 = vmatprep.subr.mxu0 0.0
        %710 = vmatpush1.msra.mxu0 %v692
        %711 = vmatprep.subr.mxu0 0.0
        %712 = vmatpush1.msra.mxu0 %v693
        %713 = vmatprep.subr.mxu0 0.0
        %714 = vmatpush1.msra.mxu0 %v694
        %715 = vmatprep.subr.mxu0 0.0
        %716 = vmatpush1.msra.mxu0 %v695
        %717 = vmatprep.subr.mxu0 0.0
        %718 = vmatpush1.msra.mxu0 %v696
        %719 = vmatprep.subr.mxu0 0.0
        %720 = vmatpush1.msra.mxu0 %v697
        %721 = vmatprep.subr.mxu0 0.0
        %722 = vmatpush1.msra.mxu0 %v698
        %723 = vmatprep.subr.mxu0 0.0
        %724 = vmatpush1.msra.mxu0 %v699
        %725 = vmatprep.subr.mxu0 0.0
        %726 = vmatpush1.msra.mxu0 %v700
        %727 = vmatprep.subr.mxu0 0.0
        %728 = vmatpush1.msra.mxu0 %v701
        %729 = vmatprep.subr.mxu0 0.0
        %730 = vmatpush1.msra.mxu0 %v702
        %731 = vmatprep.subr.mxu0 0.0
        %732 = vmatpush1.msra.mxu0 %v703
        %733 = vmatprep.subr.mxu0 0.0
        %734 = vmatpush1.msra.mxu0 %v704
        %735 = vmatprep.subr.mxu0 0.0
        %736 = vmatpush1.msra.mxu0 %v705
        %737 = vmatprep.subr.mxu0 0.0
        %738 = vmatpush1.msra.mxu0 %v706
        %739 = vmatprep.subr.mxu0 0.0
        %740 = vmatpush1.msra.mxu0 0.0
        %741 = vmatprep.subr.mxu0 0.0
        %742 = vmatpush1.msra.mxu0 0.0
        %743 = vmatprep.subr.mxu0 0.0
        %744 = vmatpush1.msra.mxu0 0.0
        %745 = vmatprep.subr.mxu0 0.0
        %746 = vmatpush1.msra.mxu0 0.0
        %747 = vmatprep.subr.mxu0 0.0
        %748 = vmatpush1.msra.mxu0 0.0
        %749 = vmatprep.subr.mxu0 0.0
        %750 = vmatpush1.msra.mxu0 0.0
        %751 = vmatprep.subr.mxu0 0.0
        %752 = vmatpush1.msra.mxu0 0.0
        %753 = vmatprep.subr.mxu0 0.0
        %754 = vmatpush1.msra.mxu0 0.0
        %755 = vmatprep.subr.mxu0 0.0
        %756 = vmatpush1.msra.mxu0 0.0
        %757 = vmatprep.subr.mxu0 0.0
        %758 = vmatpush1.msra.mxu0 0.0
        %759 = vmatprep.subr.mxu0 0.0
        %760 = vmatpush1.msra.mxu0 0.0
        %761 = vmatprep.subr.mxu0 0.0
        %762 = vmatpush1.msra.mxu0 0.0
        %763 = vmatprep.subr.mxu0 0.0
        %764 = vmatpush1.msra.mxu0 0.0
        %765 = vmatprep.subr.mxu0 0.0
        %766 = vmatpush1.msra.mxu0 0.0
        %767 = vmatprep.subr.mxu0 0.0
        %768 = vmatpush1.msra.mxu0 0.0
        %769 = vmatprep.subr.mxu0 0.0
        %770 = vmatpush1.msra.mxu0 0.0
        %771 = vmatprep.mubr.f32.mxu0 0.0
        %772 = vmatmul.mubr.f32.gmra.mrb[0].mxu0 %v472
        %v773 = vpop.f32.mrb[0].mxu0
        %v774 = vadd.f32 0.0, %v773
        %v775 = vpop.f32.mrb[0].mxu0
        %776 = vmatprep.mubr.f32.mxu0 0.0
        %777 = vmatmul.mubr.f32.gmra.mrb[0].mxu0 %v477
        %v778 = vpop.f32.mrb[0].mxu0
        %v779 = vadd.f32 0.0, %v778
        %v780 = vpop.f32.mrb[0].mxu0
        %781 = vdwg.mxu0
        %v782 = vadd.f32 %v688, %v774
        %v783 = vadd.f32 %v689, %v779
        %v784 = vmax.f32 %v782, 0.0
        %v785 = vmax.f32 %v783, 0.0
        %v786 = vld [vmem:[%s6] sm:$0x1]
        %v789 = vrot.slane %v784, 6
        %v790 = vrot.slane %v785, 6
        %v791 = vsel %vm483, %v789, %v790
        %v794 = vsel %vm483, 0.0, %v789
        %v795 = vld [vmem:[%s5] sm:$0xff]
        %v796 = vld [vmem:[%s5 + $0x8] sm:$0xff]
        %v797 = vld [vmem:[%s5 + $0x10] sm:$0xff]
        %v798 = vld [vmem:[%s5 + $0x18] sm:$0xff]
        %v799 = vld [vmem:[%s5 + $0x20] sm:$0xff]
        %v800 = vld [vmem:[%s5 + $0x28] sm:$0xff]
        %v801 = vld [vmem:[%s5 + $0x30] sm:$0xff]
        %v802 = vld [vmem:[%s5 + $0x38] sm:$0xff]
        %v803 = vld [vmem:[%s5 + $0x40] sm:$0xff]
        %v804 = vld [vmem:[%s5 + $0x48] sm:$0xff]
        %v805 = vld [vmem:[%s5 + $0x50] sm:$0xff]
        %v806 = vld [vmem:[%s5 + $0x58] sm:$0xff]
        %v807 = vld [vmem:[%s5 + $0x60] sm:$0xff]
        %v808 = vld [vmem:[%s5 + $0x68] sm:$0xff]
        %v809 = vld [vmem:[%s5 + $0x70] sm:$0xff]
        %v810 = vld [vmem:[%s5 + $0x78] sm:$0xff]
        %811 = vmatprep.subr.mxu0 0.0
        %812 = vmatpush1.msra.mxu0 %v795
        %813 = vmatprep.subr.mxu0 0.0
        %814 = vmatpush1.msra.mxu0 %v796
        %815 = vmatprep.subr.mxu0 0.0
        %816 = vmatpush1.msra.mxu0 %v797
        %817 = vmatprep.subr.mxu0 0.0
        %818 = vmatpush1.msra.mxu0 %v798
        %819 = vmatprep.subr.mxu0 0.0
        %820 = vmatpush1.msra.mxu0 %v799
        %821 = vmatprep.subr.mxu0 0.0
        %822 = vmatpush1.msra.mxu0 %v800
        %823 = vmatprep.subr.mxu0 0.0
        %824 = vmatpush1.msra.mxu0 %v801
        %825 = vmatprep.subr.mxu0 0.0
        %826 = vmatpush1.msra.mxu0 %v802
        %827 = vmatprep.subr.mxu0 0.0
        %828 = vmatpush1.msra.mxu0 %v803
        %829 = vmatprep.subr.mxu0 0.0
        %830 = vmatpush1.msra.mxu0 %v804
        %831 = vmatprep.subr.mxu0 0.0
        %832 = vmatpush1.msra.mxu0 %v805
        %833 = vmatprep.subr.mxu0 0.0
        %834 = vmatpush1.msra.mxu0 %v806
        %835 = vmatprep.subr.mxu0 0.0
        %836 = vmatpush1.msra.mxu0 %v807
        %837 = vmatprep.subr.mxu0 0.0
        %838 = vmatpush1.msra.mxu0 %v808
        %839 = vmatprep.subr.mxu0 0.0
        %840 = vmatpush1.msra.mxu0 %v809
        %841 = vmatprep.subr.mxu0 0.0
        %842 = vmatpush1.msra.mxu0 %v810
        %843 = vmatprep.subr.mxu0 0.0
        %844 = vmatpush1.msra.mxu0 0.0
        %845 = vmatprep.subr.mxu0 0.0
        %846 = vmatpush1.msra.mxu0 0.0
        %847 = vmatprep.subr.mxu0 0.0
        %848 = vmatpush1.msra.mxu0 0.0
        %849 = vmatprep.subr.mxu0 0.0
        %850 = vmatpush1.msra.mxu0 0.0
        %851 = vmatprep.subr.mxu0 0.0
        %852 = vmatpush1.msra.mxu0 0.0
        %853 = vmatprep.subr.mxu0 0.0
        %854 = vmatpush1.msra.mxu0 0.0
        %855 = vmatprep.subr.mxu0 0.0
        %856 = vmatpush1.msra.mxu0 0.0
        %857 = vmatprep.subr.mxu0 0.0
        %858 = vmatpush1.msra.mxu0 0.0
        %859 = vmatprep.subr.mxu0 0.0
        %860 = vmatpush1.msra.mxu0 0.0
        %861 = vmatprep.subr.mxu0 0.0
        %862 = vmatpush1.msra.mxu0 0.0
        %863 = vmatprep.subr.mxu0 0.0
        %864 = vmatpush1.msra.mxu0 0.0
        %865 = vmatprep.subr.mxu0 0.0
        %866 = vmatpush1.msra.mxu0 0.0
        %867 = vmatprep.subr.mxu0 0.0
        %868 = vmatpush1.msra.mxu0 0.0
        %869 = vmatprep.subr.mxu0 0.0
        %870 = vmatpush1.msra.mxu0 0.0
        %871 = vmatprep.subr.mxu0 0.0
        %872 = vmatpush1.msra.mxu0 0.0
        %873 = vmatprep.subr.mxu0 0.0
        %874 = vmatpush1.msra.mxu0 0.0
        %875 = vmatprep.mubr.f32.mxu0 0.0
        %876 = vmatmul.mubr.f32.gmra.mrb[0].mxu0 %v794
        %v877 = vpop.f32.mrb[0].mxu0
        %v878 = vadd.f32 0.0, %v877
        %v879 = vpop.f32.mrb[0].mxu0
        %880 = vmatprep.mubr.f32.mxu0 0.0
        %881 = vmatmul.mubr.f32.gmra.mrb[0].mxu0 %v791
        %v882 = vpop.f32.mrb[0].mxu0
        %v883 = vadd.f32 0.0, %v882
        %v884 = vpop.f32.mrb[0].mxu0
        %885 = vdwg.mxu0
        %v887 = vlaneseq
        %v888 = vshrl.u32 %v887, 7
        %v889 = vsub.s32 0, %v888
        %v890 = vrot.slane %v786, %v889
        %v892 = vadd.f32 %v890, %v878
        %v893 = vadd.f32 %v890, %v883
        %v894 = vrot.slane %v784, 7
        %v895 = vrot.slane %v785, 7
        %v896 = vsel %vm589, %v894, %v895
        %v899 = vsel %vm589, 0.0, %v894
        %s900 = scalar_lea.vmem %s5, 128
        %v901 = vld [vmem:[%s900] sm:$0xff]
        %v902 = vld [vmem:[%s900 + $0x8] sm:$0xff]
        %v903 = vld [vmem:[%s900 + $0x10] sm:$0xff]
        %v904 = vld [vmem:[%s900 + $0x18] sm:$0xff]
        %v905 = vld [vmem:[%s900 + $0x20] sm:$0xff]
        %v906 = vld [vmem:[%s900 + $0x28] sm:$0xff]
        %v907 = vld [vmem:[%s900 + $0x30] sm:$0xff]
        %v908 = vld [vmem:[%s900 + $0x38] sm:$0xff]
        %v909 = vld [vmem:[%s900 + $0x40] sm:$0xff]
        %v910 = vld [vmem:[%s900 + $0x48] sm:$0xff]
        %v911 = vld [vmem:[%s900 + $0x50] sm:$0xff]
        %v912 = vld [vmem:[%s900 + $0x58] sm:$0xff]
        %v913 = vld [vmem:[%s900 + $0x60] sm:$0xff]
        %v914 = vld [vmem:[%s900 + $0x68] sm:$0xff]
        %v915 = vld [vmem:[%s900 + $0x70] sm:$0xff]
        %v916 = vld [vmem:[%s900 + $0x78] sm:$0xff]
        %917 = vmatprep.subr.mxu0 0.0
        %918 = vmatpush1.msra.mxu0 %v901
        %919 = vmatprep.subr.mxu0 0.0
        %920 = vmatpush1.msra.mxu0 %v902
        %921 = vmatprep.subr.mxu0 0.0
        %922 = vmatpush1.msra.mxu0 %v903
        %923 = vmatprep.subr.mxu0 0.0
        %924 = vmatpush1.msra.mxu0 %v904
        %925 = vmatprep.subr.mxu0 0.0
        %926 = vmatpush1.msra.mxu0 %v905
        %927 = vmatprep.subr.mxu0 0.0
        %928 = vmatpush1.msra.mxu0 %v906
        %929 = vmatprep.subr.mxu0 0.0
        %930 = vmatpush1.msra.mxu0 %v907
        %931 = vmatprep.subr.mxu0 0.0
        %932 = vmatpush1.msra.mxu0 %v908
        %933 = vmatprep.subr.mxu0 0.0
        %934 = vmatpush1.msra.mxu0 %v909
        %935 = vmatprep.subr.mxu0 0.0
        %936 = vmatpush1.msra.mxu0 %v910
        %937 = vmatprep.subr.mxu0 0.0
        %938 = vmatpush1.msra.mxu0 %v911
        %939 = vmatprep.subr.mxu0 0.0
        %940 = vmatpush1.msra.mxu0 %v912
        %941 = vmatprep.subr.mxu0 0.0
        %942 = vmatpush1.msra.mxu0 %v913
        %943 = vmatprep.subr.mxu0 0.0
        %944 = vmatpush1.msra.mxu0 %v914
        %945 = vmatprep.subr.mxu0 0.0
        %946 = vmatpush1.msra.mxu0 %v915
        %947 = vmatprep.subr.mxu0 0.0
        %948 = vmatpush1.msra.mxu0 %v916
        %949 = vmatprep.subr.mxu0 0.0
        %950 = vmatpush1.msra.mxu0 0.0
        %951 = vmatprep.subr.mxu0 0.0
        %952 = vmatpush1.msra.mxu0 0.0
        %953 = vmatprep.subr.mxu0 0.0
        %954 = vmatpush1.msra.mxu0 0.0
        %955 = vmatprep.subr.mxu0 0.0
        %956 = vmatpush1.msra.mxu0 0.0
        %957 = vmatprep.subr.mxu0 0.0
        %958 = vmatpush1.msra.mxu0 0.0
        %959 = vmatprep.subr.mxu0 0.0
        %960 = vmatpush1.msra.mxu0 0.0
        %961 = vmatprep.subr.mxu0 0.0
        %962 = vmatpush1.msra.mxu0 0.0
        %963 = vmatprep.subr.mxu0 0.0
        %964 = vmatpush1.msra.mxu0 0.0
        %965 = vmatprep.subr.mxu0 0.0
        %966 = vmatpush1.msra.mxu0 0.0
        %967 = vmatprep.subr.mxu0 0.0
        %968 = vmatpush1.msra.mxu0 0.0
        %969 = vmatprep.subr.mxu0 0.0
        %970 = vmatpush1.msra.mxu0 0.0
        %971 = vmatprep.subr.mxu0 0.0
        %972 = vmatpush1.msra.mxu0 0.0
        %973 = vmatprep.subr.mxu0 0.0
        %974 = vmatpush1.msra.mxu0 0.0
        %975 = vmatprep.subr.mxu0 0.0
        %976 = vmatpush1.msra.mxu0 0.0
        %977 = vmatprep.subr.mxu0 0.0
        %978 = vmatpush1.msra.mxu0 0.0
        %979 = vmatprep.subr.mxu0 0.0
        %980 = vmatpush1.msra.mxu0 0.0
        %981 = vmatprep.mubr.f32.mxu0 0.0
        %982 = vmatmul.mubr.f32.gmra.mrb[0].mxu0 %v899
        %v983 = vpop.f32.mrb[0].mxu0
        %v984 = vadd.f32 0.0, %v983
        %v985 = vpop.f32.mrb[0].mxu0
        %986 = vmatprep.mubr.f32.mxu0 0.0
        %987 = vmatmul.mubr.f32.gmra.mrb[0].mxu0 %v896
        %v988 = vpop.f32.mrb[0].mxu0
        %v989 = vadd.f32 0.0, %v988
        %v990 = vpop.f32.mrb[0].mxu0
        %991 = vdwg.mxu0
        %v992 = vadd.f32 %v892, %v984
        %v993 = vadd.f32 %v893, %v989
        %s994 = scalar_lea.vmem %s5, 256
        %v995 = vld [vmem:[%s994] sm:$0xff]
        %v996 = vld [vmem:[%s994 + $0x8] sm:$0xff]
        %v997 = vld [vmem:[%s994 + $0x10] sm:$0xff]
        %v998 = vld [vmem:[%s994 + $0x18] sm:$0xff]
        %v999 = vld [vmem:[%s994 + $0x20] sm:$0xff]
        %v1000 = vld [vmem:[%s994 + $0x28] sm:$0xff]
        %v1001 = vld [vmem:[%s994 + $0x30] sm:$0xff]
        %v1002 = vld [vmem:[%s994 + $0x38] sm:$0xff]
        %v1003 = vld [vmem:[%s994 + $0x40] sm:$0xff]
        %v1004 = vld [vmem:[%s994 + $0x48] sm:$0xff]
        %v1005 = vld [vmem:[%s994 + $0x50] sm:$0xff]
        %v1006 = vld [vmem:[%s994 + $0x58] sm:$0xff]
        %v1007 = vld [vmem:[%s994 + $0x60] sm:$0xff]
        %v1008 = vld [vmem:[%s994 + $0x68] sm:$0xff]
        %v1009 = vld [vmem:[%s994 + $0x70] sm:$0xff]
        %v1010 = vld [vmem:[%s994 + $0x78] sm:$0xff]
        %1011 = vmatprep.subr.mxu0 0.0
        %1012 = vmatpush1.msra.mxu0 %v995
        %1013 = vmatprep.subr.mxu0 0.0
        %1014 = vmatpush1.msra.mxu0 %v996
        %1015 = vmatprep.subr.mxu0 0.0
        %1016 = vmatpush1.msra.mxu0 %v997
        %1017 = vmatprep.subr.mxu0 0.0
        %1018 = vmatpush1.msra.mxu0 %v998
        %1019 = vmatprep.subr.mxu0 0.0
        %1020 = vmatpush1.msra.mxu0 %v999
        %1021 = vmatprep.subr.mxu0 0.0
        %1022 = vmatpush1.msra.mxu0 %v1000
        %1023 = vmatprep.subr.mxu0 0.0
        %1024 = vmatpush1.msra.mxu0 %v1001
        %1025 = vmatprep.subr.mxu0 0.0
        %1026 = vmatpush1.msra.mxu0 %v1002
        %1027 = vmatprep.subr.mxu0 0.0
        %1028 = vmatpush1.msra.mxu0 %v1003
        %1029 = vmatprep.subr.mxu0 0.0
        %1030 = vmatpush1.msra.mxu0 %v1004
        %1031 = vmatprep.subr.mxu0 0.0
        %1032 = vmatpush1.msra.mxu0 %v1005
        %1033 = vmatprep.subr.mxu0 0.0
        %1034 = vmatpush1.msra.mxu0 %v1006
        %1035 = vmatprep.subr.mxu0 0.0
        %1036 = vmatpush1.msra.mxu0 %v1007
        %1037 = vmatprep.subr.mxu0 0.0
        %1038 = vmatpush1.msra.mxu0 %v1008
        %1039 = vmatprep.subr.mxu0 0.0
        %1040 = vmatpush1.msra.mxu0 %v1009
        %1041 = vmatprep.subr.mxu0 0.0
        %1042 = vmatpush1.msra.mxu0 %v1010
        %1043 = vmatprep.subr.mxu0 0.0
        %1044 = vmatpush1.msra.mxu0 0.0
        %1045 = vmatprep.subr.mxu0 0.0
        %1046 = vmatpush1.msra.mxu0 0.0
        %1047 = vmatprep.subr.mxu0 0.0
        %1048 = vmatpush1.msra.mxu0 0.0
        %1049 = vmatprep.subr.mxu0 0.0
        %1050 = vmatpush1.msra.mxu0 0.0
        %1051 = vmatprep.subr.mxu0 0.0
        %1052 = vmatpush1.msra.mxu0 0.0
        %1053 = vmatprep.subr.mxu0 0.0
        %1054 = vmatpush1.msra.mxu0 0.0
        %1055 = vmatprep.subr.mxu0 0.0
        %1056 = vmatpush1.msra.mxu0 0.0
        %1057 = vmatprep.subr.mxu0 0.0
        %1058 = vmatpush1.msra.mxu0 0.0
        %1059 = vmatprep.subr.mxu0 0.0
        %1060 = vmatpush1.msra.mxu0 0.0
        %1061 = vmatprep.subr.mxu0 0.0
        %1062 = vmatpush1.msra.mxu0 0.0
        %1063 = vmatprep.subr.mxu0 0.0
        %1064 = vmatpush1.msra.mxu0 0.0
        %1065 = vmatprep.subr.mxu0 0.0
        %1066 = vmatpush1.msra.mxu0 0.0
        %1067 = vmatprep.subr.mxu0 0.0
        %1068 = vmatpush1.msra.mxu0 0.0
        %1069 = vmatprep.subr.mxu0 0.0
        %1070 = vmatpush1.msra.mxu0 0.0
        %1071 = vmatprep.subr.mxu0 0.0
        %1072 = vmatpush1.msra.mxu0 0.0
        %1073 = vmatprep.subr.mxu0 0.0
        %1074 = vmatpush1.msra.mxu0 0.0
        %1075 = vmatprep.mubr.f32.mxu0 0.0
        %1076 = vmatmul.mubr.f32.gmra.mrb[0].mxu0 %v784
        %v1077 = vpop.f32.mrb[0].mxu0
        %v1078 = vadd.f32 0.0, %v1077
        %v1079 = vpop.f32.mrb[0].mxu0
        %1080 = vmatprep.mubr.f32.mxu0 0.0
        %1081 = vmatmul.mubr.f32.gmra.mrb[0].mxu0 %v785
        %v1082 = vpop.f32.mrb[0].mxu0
        %v1083 = vadd.f32 0.0, %v1082
        %v1084 = vpop.f32.mrb[0].mxu0
        %1085 = vdwg.mxu0
        %v1086 = vadd.f32 %v992, %v1078
        %v1087 = vadd.f32 %v993, %v1083
        %v1088 = vmax.f32 %v1086, 0.0
        %v1089 = vmax.f32 %v1087, 0.0
        %v1090 = vld [vmem:[%s7] sm:$0xff]
        %v1091 = vld [vmem:[%s7 + $0x8] sm:$0xff]
        %v1092 = vld [vmem:[%s7 + $0x10] sm:$0xff]
        %v1093 = vld [vmem:[%s7 + $0x18] sm:$0xff]
        %v1094 = vld [vmem:[%s7 + $0x20] sm:$0xff]
        %v1095 = vld [vmem:[%s7 + $0x28] sm:$0xff]
        %v1096 = vld [vmem:[%s7 + $0x30] sm:$0xff]
        %v1097 = vld [vmem:[%s7 + $0x38] sm:$0xff]
        %v1098 = vld [vmem:[%s7 + $0x40] sm:$0xff]
        %v1099 = vld [vmem:[%s7 + $0x48] sm:$0xff]
        %v1100 = vld [vmem:[%s7 + $0x50] sm:$0xff]
        %v1101 = vld [vmem:[%s7 + $0x58] sm:$0xff]
        %v1102 = vld [vmem:[%s7 + $0x60] sm:$0xff]
        %v1103 = vld [vmem:[%s7 + $0x68] sm:$0xff]
        %v1104 = vld [vmem:[%s7 + $0x70] sm:$0xff]
        %v1105 = vld [vmem:[%s7 + $0x78] sm:$0xff]
        %v1106 = vld [vmem:[%s8] sm:$0x1]
        %v1108 = vlaneseq
        %v1109 = vshrl.u32 %v1108, 7
        %v1110 = vsub.s32 0, %v1109
        %v1111 = vrot.slane %v1106, %v1110
        %1113 = vmatprep.subr.mxu0 0.0
        %1114 = vmatpush1.msra.mxu0 %v1090
        %1115 = vmatprep.subr.mxu0 0.0
        %1116 = vmatpush1.msra.mxu0 %v1091
        %1117 = vmatprep.subr.mxu0 0.0
        %1118 = vmatpush1.msra.mxu0 %v1092
        %1119 = vmatprep.subr.mxu0 0.0
        %1120 = vmatpush1.msra.mxu0 %v1093
        %1121 = vmatprep.subr.mxu0 0.0
        %1122 = vmatpush1.msra.mxu0 %v1094
        %1123 = vmatprep.subr.mxu0 0.0
        %1124 = vmatpush1.msra.mxu0 %v1095
        %1125 = vmatprep.subr.mxu0 0.0
        %1126 = vmatpush1.msra.mxu0 %v1096
        %1127 = vmatprep.subr.mxu0 0.0
        %1128 = vmatpush1.msra.mxu0 %v1097
        %1129 = vmatprep.subr.mxu0 0.0
        %1130 = vmatpush1.msra.mxu0 %v1098
        %1131 = vmatprep.subr.mxu0 0.0
        %1132 = vmatpush1.msra.mxu0 %v1099
        %1133 = vmatprep.subr.mxu0 0.0
        %1134 = vmatpush1.msra.mxu0 %v1100
        %1135 = vmatprep.subr.mxu0 0.0
        %1136 = vmatpush1.msra.mxu0 %v1101
        %1137 = vmatprep.subr.mxu0 0.0
        %1138 = vmatpush1.msra.mxu0 %v1102
        %1139 = vmatprep.subr.mxu0 0.0
        %1140 = vmatpush1.msra.mxu0 %v1103
        %1141 = vmatprep.subr.mxu0 0.0
        %1142 = vmatpush1.msra.mxu0 %v1104
        %1143 = vmatprep.subr.mxu0 0.0
        %1144 = vmatpush1.msra.mxu0 %v1105
        %1145 = vmatprep.subr.mxu0 0.0
        %1146 = vmatpush1.msra.mxu0 0.0
        %1147 = vmatprep.subr.mxu0 0.0
        %1148 = vmatpush1.msra.mxu0 0.0
        %1149 = vmatprep.subr.mxu0 0.0
        %1150 = vmatpush1.msra.mxu0 0.0
        %1151 = vmatprep.subr.mxu0 0.0
        %1152 = vmatpush1.msra.mxu0 0.0
        %1153 = vmatprep.subr.mxu0 0.0
        %1154 = vmatpush1.msra.mxu0 0.0
        %1155 = vmatprep.subr.mxu0 0.0
        %1156 = vmatpush1.msra.mxu0 0.0
        %1157 = vmatprep.subr.mxu0 0.0
        %1158 = vmatpush1.msra.mxu0 0.0
        %1159 = vmatprep.subr.mxu0 0.0
        %1160 = vmatpush1.msra.mxu0 0.0
        %1161 = vmatprep.subr.mxu0 0.0
        %1162 = vmatpush1.msra.mxu0 0.0
        %1163 = vmatprep.subr.mxu0 0.0
        %1164 = vmatpush1.msra.mxu0 0.0
        %1165 = vmatprep.subr.mxu0 0.0
        %1166 = vmatpush1.msra.mxu0 0.0
        %1167 = vmatprep.subr.mxu0 0.0
        %1168 = vmatpush1.msra.mxu0 0.0
        %1169 = vmatprep.subr.mxu0 0.0
        %1170 = vmatpush1.msra.mxu0 0.0
        %1171 = vmatprep.subr.mxu0 0.0
        %1172 = vmatpush1.msra.mxu0 0.0
        %1173 = vmatprep.subr.mxu0 0.0
        %1174 = vmatpush1.msra.mxu0 0.0
        %1175 = vmatprep.subr.mxu0 0.0
        %1176 = vmatpush1.msra.mxu0 0.0
        %1177 = vmatprep.mubr.f32.mxu0 0.0
        %1178 = vmatmul.mubr.f32.gmra.mrb[0].mxu0 %v472
        %v1179 = vpop.f32.mrb[0].mxu0
        %v1180 = vadd.f32 %v1111, %v1179
        %v1181 = vpop.f32.mrb[0].mxu0
        %1182 = vmatprep.mubr.f32.mxu0 0.0
        %1183 = vmatmul.mubr.f32.gmra.mrb[0].mxu0 %v477
        %v1184 = vpop.f32.mrb[0].mxu0
        %v1185 = vadd.f32 %v1111, %v1184
        %v1186 = vpop.f32.mrb[0].mxu0
        %1187 = vdwg.mxu0
        %v1188 = vadd.f32 %v1088, %v1180
        %v1189 = vadd.f32 %v1089, %v1185
        %v1190 = vmax.f32 %v1188, 0.0
        %v1191 = vmax.f32 %v1189, 0.0
        %s1192 = scalar_lea.vmem %s4, 1
        %v1193 = vld [vmem:[%s1192] sm:$0x1]
        %vm1196 = vcmask 1043456
        %v1197 = vrot.slane %v1190, 4
        %v1198 = vrot.slane %v1191, 4
        %v1199 = vsel %vm1196, %v1197, %v1198
        %v1202 = vsel %vm1196, 0.0, %v1197
        %s1203 = scalar_lea.vmem %s3, 384
        %v1204 = vld [vmem:[%s1203] sm:$0xff]
        %v1205 = vld [vmem:[%s1203 + $0x8] sm:$0xff]
        %v1206 = vld [vmem:[%s1203 + $0x10] sm:$0xff]
        %v1207 = vld [vmem:[%s1203 + $0x18] sm:$0xff]
        %v1208 = vld [vmem:[%s1203 + $0x20] sm:$0xff]
        %v1209 = vld [vmem:[%s1203 + $0x28] sm:$0xff]
        %v1210 = vld [vmem:[%s1203 + $0x30] sm:$0xff]
        %v1211 = vld [vmem:[%s1203 + $0x38] sm:$0xff]
        %v1212 = vld [vmem:[%s1203 + $0x40] sm:$0xff]
        %v1213 = vld [vmem:[%s1203 + $0x48] sm:$0xff]
        %v1214 = vld [vmem:[%s1203 + $0x50] sm:$0xff]
        %v1215 = vld [vmem:[%s1203 + $0x58] sm:$0xff]
        %v1216 = vld [vmem:[%s1203 + $0x60] sm:$0xff]
        %v1217 = vld [vmem:[%s1203 + $0x68] sm:$0xff]
        %v1218 = vld [vmem:[%s1203 + $0x70] sm:$0xff]
        %v1219 = vld [vmem:[%s1203 + $0x78] sm:$0xff]
        %1220 = vmatprep.subr.mxu0 0.0
        %1221 = vmatpush1.msra.mxu0 %v1204
        %1222 = vmatprep.subr.mxu0 0.0
        %1223 = vmatpush1.msra.mxu0 %v1205
        %1224 = vmatprep.subr.mxu0 0.0
        %1225 = vmatpush1.msra.mxu0 %v1206
        %1226 = vmatprep.subr.mxu0 0.0
        %1227 = vmatpush1.msra.mxu0 %v1207
        %1228 = vmatprep.subr.mxu0 0.0
        %1229 = vmatpush1.msra.mxu0 %v1208
        %1230 = vmatprep.subr.mxu0 0.0
        %1231 = vmatpush1.msra.mxu0 %v1209
        %1232 = vmatprep.subr.mxu0 0.0
        %1233 = vmatpush1.msra.mxu0 %v1210
        %1234 = vmatprep.subr.mxu0 0.0
        %1235 = vmatpush1.msra.mxu0 %v1211
        %1236 = vmatprep.subr.mxu0 0.0
        %1237 = vmatpush1.msra.mxu0 %v1212
        %1238 = vmatprep.subr.mxu0 0.0
        %1239 = vmatpush1.msra.mxu0 %v1213
        %1240 = vmatprep.subr.mxu0 0.0
        %1241 = vmatpush1.msra.mxu0 %v1214
        %1242 = vmatprep.subr.mxu0 0.0
        %1243 = vmatpush1.msra.mxu0 %v1215
        %1244 = vmatprep.subr.mxu0 0.0
        %1245 = vmatpush1.msra.mxu0 %v1216
        %1246 = vmatprep.subr.mxu0 0.0
        %1247 = vmatpush1.msra.mxu0 %v1217
        %1248 = vmatprep.subr.mxu0 0.0
        %1249 = vmatpush1.msra.mxu0 %v1218
        %1250 = vmatprep.subr.mxu0 0.0
        %1251 = vmatpush1.msra.mxu0 %v1219
        %1252 = vmatprep.subr.mxu0 0.0
        %1253 = vmatpush1.msra.mxu0 0.0
        %1254 = vmatprep.subr.mxu0 0.0
        %1255 = vmatpush1.msra.mxu0 0.0
        %1256 = vmatprep.subr.mxu0 0.0
        %1257 = vmatpush1.msra.mxu0 0.0
        %1258 = vmatprep.subr.mxu0 0.0
        %1259 = vmatpush1.msra.mxu0 0.0
        %1260 = vmatprep.subr.mxu0 0.0
        %1261 = vmatpush1.msra.mxu0 0.0
        %1262 = vmatprep.subr.mxu0 0.0
        %1263 = vmatpush1.msra.mxu0 0.0
        %1264 = vmatprep.subr.mxu0 0.0
        %1265 = vmatpush1.msra.mxu0 0.0
        %1266 = vmatprep.subr.mxu0 0.0
        %1267 = vmatpush1.msra.mxu0 0.0
        %1268 = vmatprep.subr.mxu0 0.0
        %1269 = vmatpush1.msra.mxu0 0.0
        %1270 = vmatprep.subr.mxu0 0.0
        %1271 = vmatpush1.msra.mxu0 0.0
        %1272 = vmatprep.subr.mxu0 0.0
        %1273 = vmatpush1.msra.mxu0 0.0
        %1274 = vmatprep.subr.mxu0 0.0
        %1275 = vmatpush1.msra.mxu0 0.0
        %1276 = vmatprep.subr.mxu0 0.0
        %1277 = vmatpush1.msra.mxu0 0.0
        %1278 = vmatprep.subr.mxu0 0.0
        %1279 = vmatpush1.msra.mxu0 0.0
        %1280 = vmatprep.subr.mxu0 0.0
        %1281 = vmatpush1.msra.mxu0 0.0
        %1282 = vmatprep.subr.mxu0 0.0
        %1283 = vmatpush1.msra.mxu0 0.0
        %1284 = vmatprep.mubr.f32.mxu0 0.0
        %1285 = vmatmul.mubr.f32.gmra.mrb[0].mxu0 %v1202
        %v1286 = vpop.f32.mrb[0].mxu0
        %v1287 = vadd.f32 0.0, %v1286
        %v1288 = vpop.f32.mrb[0].mxu0
        %1289 = vmatprep.mubr.f32.mxu0 0.0
        %1290 = vmatmul.mubr.f32.gmra.mrb[0].mxu0 %v1199
        %v1291 = vpop.f32.mrb[0].mxu0
        %v1292 = vadd.f32 0.0, %v1291
        %v1293 = vpop.f32.mrb[0].mxu0
        %1294 = vdwg.mxu0
        %v1296 = vlaneseq
        %v1297 = vshrl.u32 %v1296, 7
        %v1298 = vsub.s32 0, %v1297
        %v1299 = vrot.slane %v1193, %v1298
        %v1301 = vadd.f32 %v1299, %v1287
        %v1302 = vadd.f32 %v1299, %v1292
        %v1303 = vrot.slane %v1190, 6
        %v1304 = vrot.slane %v1191, 6
        %v1305 = vsel %vm483, %v1303, %v1304
        %v1308 = vsel %vm483, 0.0, %v1303
        %s1309 = scalar_lea.vmem %s3, 512
        %v1310 = vld [vmem:[%s1309] sm:$0xff]
        %v1311 = vld [vmem:[%s1309 + $0x8] sm:$0xff]
        %v1312 = vld [vmem:[%s1309 + $0x10] sm:$0xff]
        %v1313 = vld [vmem:[%s1309 + $0x18] sm:$0xff]
        %v1314 = vld [vmem:[%s1309 + $0x20] sm:$0xff]
        %v1315 = vld [vmem:[%s1309 + $0x28] sm:$0xff]
        %v1316 = vld [vmem:[%s1309 + $0x30] sm:$0xff]
        %v1317 = vld [vmem:[%s1309 + $0x38] sm:$0xff]
        %v1318 = vld [vmem:[%s1309 + $0x40] sm:$0xff]
        %v1319 = vld [vmem:[%s1309 + $0x48] sm:$0xff]
        %v1320 = vld [vmem:[%s1309 + $0x50] sm:$0xff]
        %v1321 = vld [vmem:[%s1309 + $0x58] sm:$0xff]
        %v1322 = vld [vmem:[%s1309 + $0x60] sm:$0xff]
        %v1323 = vld [vmem:[%s1309 + $0x68] sm:$0xff]
        %v1324 = vld [vmem:[%s1309 + $0x70] sm:$0xff]
        %v1325 = vld [vmem:[%s1309 + $0x78] sm:$0xff]
        %1326 = vmatprep.subr.mxu0 0.0
        %1327 = vmatpush1.msra.mxu0 %v1310
        %1328 = vmatprep.subr.mxu0 0.0
        %1329 = vmatpush1.msra.mxu0 %v1311
        %1330 = vmatprep.subr.mxu0 0.0
        %1331 = vmatpush1.msra.mxu0 %v1312
        %1332 = vmatprep.subr.mxu0 0.0
        %1333 = vmatpush1.msra.mxu0 %v1313
        %1334 = vmatprep.subr.mxu0 0.0
        %1335 = vmatpush1.msra.mxu0 %v1314
        %1336 = vmatprep.subr.mxu0 0.0
        %1337 = vmatpush1.msra.mxu0 %v1315
        %1338 = vmatprep.subr.mxu0 0.0
        %1339 = vmatpush1.msra.mxu0 %v1316
        %1340 = vmatprep.subr.mxu0 0.0
        %1341 = vmatpush1.msra.mxu0 %v1317
        %1342 = vmatprep.subr.mxu0 0.0
        %1343 = vmatpush1.msra.mxu0 %v1318
        %1344 = vmatprep.subr.mxu0 0.0
        %1345 = vmatpush1.msra.mxu0 %v1319
        %1346 = vmatprep.subr.mxu0 0.0
        %1347 = vmatpush1.msra.mxu0 %v1320
        %1348 = vmatprep.subr.mxu0 0.0
        %1349 = vmatpush1.msra.mxu0 %v1321
        %1350 = vmatprep.subr.mxu0 0.0
        %1351 = vmatpush1.msra.mxu0 %v1322
        %1352 = vmatprep.subr.mxu0 0.0
        %1353 = vmatpush1.msra.mxu0 %v1323
        %1354 = vmatprep.subr.mxu0 0.0
        %1355 = vmatpush1.msra.mxu0 %v1324
        %1356 = vmatprep.subr.mxu0 0.0
        %1357 = vmatpush1.msra.mxu0 %v1325
        %1358 = vmatprep.subr.mxu0 0.0
        %1359 = vmatpush1.msra.mxu0 0.0
        %1360 = vmatprep.subr.mxu0 0.0
        %1361 = vmatpush1.msra.mxu0 0.0
        %1362 = vmatprep.subr.mxu0 0.0
        %1363 = vmatpush1.msra.mxu0 0.0
        %1364 = vmatprep.subr.mxu0 0.0
        %1365 = vmatpush1.msra.mxu0 0.0
        %1366 = vmatprep.subr.mxu0 0.0
        %1367 = vmatpush1.msra.mxu0 0.0
        %1368 = vmatprep.subr.mxu0 0.0
        %1369 = vmatpush1.msra.mxu0 0.0
        %1370 = vmatprep.subr.mxu0 0.0
        %1371 = vmatpush1.msra.mxu0 0.0
        %1372 = vmatprep.subr.mxu0 0.0
        %1373 = vmatpush1.msra.mxu0 0.0
        %1374 = vmatprep.subr.mxu0 0.0
        %1375 = vmatpush1.msra.mxu0 0.0
        %1376 = vmatprep.subr.mxu0 0.0
        %1377 = vmatpush1.msra.mxu0 0.0
        %1378 = vmatprep.subr.mxu0 0.0
        %1379 = vmatpush1.msra.mxu0 0.0
        %1380 = vmatprep.subr.mxu0 0.0
        %1381 = vmatpush1.msra.mxu0 0.0
        %1382 = vmatprep.subr.mxu0 0.0
        %1383 = vmatpush1.msra.mxu0 0.0
        %1384 = vmatprep.subr.mxu0 0.0
        %1385 = vmatpush1.msra.mxu0 0.0
        %1386 = vmatprep.subr.mxu0 0.0
        %1387 = vmatpush1.msra.mxu0 0.0
        %1388 = vmatprep.subr.mxu0 0.0
        %1389 = vmatpush1.msra.mxu0 0.0
        %1390 = vmatprep.mubr.f32.mxu0 0.0
        %1391 = vmatmul.mubr.f32.gmra.mrb[0].mxu0 %v1308
        %v1392 = vpop.f32.mrb[0].mxu0
        %v1393 = vadd.f32 0.0, %v1392
        %v1394 = vpop.f32.mrb[0].mxu0
        %1395 = vmatprep.mubr.f32.mxu0 0.0
        %1396 = vmatmul.mubr.f32.gmra.mrb[0].mxu0 %v1305
        %v1397 = vpop.f32.mrb[0].mxu0
        %v1398 = vadd.f32 0.0, %v1397
        %v1399 = vpop.f32.mrb[0].mxu0
        %1400 = vdwg.mxu0
        %v1401 = vadd.f32 %v1301, %v1393
        %v1402 = vadd.f32 %v1302, %v1398
        %s1403 = scalar_lea.vmem %s3, 640
        %v1404 = vld [vmem:[%s1403] sm:$0xff]
        %v1405 = vld [vmem:[%s1403 + $0x8] sm:$0xff]
        %v1406 = vld [vmem:[%s1403 + $0x10] sm:$0xff]
        %v1407 = vld [vmem:[%s1403 + $0x18] sm:$0xff]
        %v1408 = vld [vmem:[%s1403 + $0x20] sm:$0xff]
        %v1409 = vld [vmem:[%s1403 + $0x28] sm:$0xff]
        %v1410 = vld [vmem:[%s1403 + $0x30] sm:$0xff]
        %v1411 = vld [vmem:[%s1403 + $0x38] sm:$0xff]
        %v1412 = vld [vmem:[%s1403 + $0x40] sm:$0xff]
        %v1413 = vld [vmem:[%s1403 + $0x48] sm:$0xff]
        %v1414 = vld [vmem:[%s1403 + $0x50] sm:$0xff]
        %v1415 = vld [vmem:[%s1403 + $0x58] sm:$0xff]
        %v1416 = vld [vmem:[%s1403 + $0x60] sm:$0xff]
        %v1417 = vld [vmem:[%s1403 + $0x68] sm:$0xff]
        %v1418 = vld [vmem:[%s1403 + $0x70] sm:$0xff]
        %v1419 = vld [vmem:[%s1403 + $0x78] sm:$0xff]
        %1420 = vmatprep.subr.mxu0 0.0
        %1421 = vmatpush1.msra.mxu0 %v1404
        %1422 = vmatprep.subr.mxu0 0.0
        %1423 = vmatpush1.msra.mxu0 %v1405
        %1424 = vmatprep.subr.mxu0 0.0
        %1425 = vmatpush1.msra.mxu0 %v1406
        %1426 = vmatprep.subr.mxu0 0.0
        %1427 = vmatpush1.msra.mxu0 %v1407
        %1428 = vmatprep.subr.mxu0 0.0
        %1429 = vmatpush1.msra.mxu0 %v1408
        %1430 = vmatprep.subr.mxu0 0.0
        %1431 = vmatpush1.msra.mxu0 %v1409
        %1432 = vmatprep.subr.mxu0 0.0
        %1433 = vmatpush1.msra.mxu0 %v1410
        %1434 = vmatprep.subr.mxu0 0.0
        %1435 = vmatpush1.msra.mxu0 %v1411
        %1436 = vmatprep.subr.mxu0 0.0
        %1437 = vmatpush1.msra.mxu0 %v1412
        %1438 = vmatprep.subr.mxu0 0.0
        %1439 = vmatpush1.msra.mxu0 %v1413
        %1440 = vmatprep.subr.mxu0 0.0
        %1441 = vmatpush1.msra.mxu0 %v1414
        %1442 = vmatprep.subr.mxu0 0.0
        %1443 = vmatpush1.msra.mxu0 %v1415
        %1444 = vmatprep.subr.mxu0 0.0
        %1445 = vmatpush1.msra.mxu0 %v1416
        %1446 = vmatprep.subr.mxu0 0.0
        %1447 = vmatpush1.msra.mxu0 %v1417
        %1448 = vmatprep.subr.mxu0 0.0
        %1449 = vmatpush1.msra.mxu0 %v1418
        %1450 = vmatprep.subr.mxu0 0.0
        %1451 = vmatpush1.msra.mxu0 %v1419
        %1452 = vmatprep.subr.mxu0 0.0
        %1453 = vmatpush1.msra.mxu0 0.0
        %1454 = vmatprep.subr.mxu0 0.0
        %1455 = vmatpush1.msra.mxu0 0.0
        %1456 = vmatprep.subr.mxu0 0.0
        %1457 = vmatpush1.msra.mxu0 0.0
        %1458 = vmatprep.subr.mxu0 0.0
        %1459 = vmatpush1.msra.mxu0 0.0
        %1460 = vmatprep.subr.mxu0 0.0
        %1461 = vmatpush1.msra.mxu0 0.0
        %1462 = vmatprep.subr.mxu0 0.0
        %1463 = vmatpush1.msra.mxu0 0.0
        %1464 = vmatprep.subr.mxu0 0.0
        %1465 = vmatpush1.msra.mxu0 0.0
        %1466 = vmatprep.subr.mxu0 0.0
        %1467 = vmatpush1.msra.mxu0 0.0
        %1468 = vmatprep.subr.mxu0 0.0
        %1469 = vmatpush1.msra.mxu0 0.0
        %1470 = vmatprep.subr.mxu0 0.0
        %1471 = vmatpush1.msra.mxu0 0.0
        %1472 = vmatprep.subr.mxu0 0.0
        %1473 = vmatpush1.msra.mxu0 0.0
        %1474 = vmatprep.subr.mxu0 0.0
        %1475 = vmatpush1.msra.mxu0 0.0
        %1476 = vmatprep.subr.mxu0 0.0
        %1477 = vmatpush1.msra.mxu0 0.0
        %1478 = vmatprep.subr.mxu0 0.0
        %1479 = vmatpush1.msra.mxu0 0.0
        %1480 = vmatprep.subr.mxu0 0.0
        %1481 = vmatpush1.msra.mxu0 0.0
        %1482 = vmatprep.subr.mxu0 0.0
        %1483 = vmatpush1.msra.mxu0 0.0
        %1484 = vmatprep.mubr.f32.mxu0 0.0
        %1485 = vmatmul.mubr.f32.gmra.mrb[0].mxu0 %v1190
        %v1486 = vpop.f32.mrb[0].mxu0
        %v1487 = vadd.f32 0.0, %v1486
        %v1488 = vpop.f32.mrb[0].mxu0
        %1489 = vmatprep.mubr.f32.mxu0 0.0
        %1490 = vmatmul.mubr.f32.gmra.mrb[0].mxu0 %v1191
        %v1491 = vpop.f32.mrb[0].mxu0
        %v1492 = vadd.f32 0.0, %v1491
        %v1493 = vpop.f32.mrb[0].mxu0
        %1494 = vdwg.mxu0
        %v1495 = vadd.f32 %v1401, %v1487
        %v1496 = vadd.f32 %v1402, %v1492
        %v1497 = vmax.f32 %v1495, 0.0
        %v1498 = vmax.f32 %v1496, 0.0
        %s1499 = scalar_lea.vmem %s6, 1
        %v1500 = vld [vmem:[%s1499] sm:$0x1]
        %v1503 = vrot.slane %v1497, 4
        %v1504 = vrot.slane %v1498, 4
        %v1505 = vsel %vm1196, %v1503, %v1504
        %v1508 = vsel %vm1196, 0.0, %v1503
        %s1509 = scalar_lea.vmem %s5, 384
        %v1510 = vld [vmem:[%s1509] sm:$0xff]
        %v1511 = vld [vmem:[%s1509 + $0x8] sm:$0xff]
        %v1512 = vld [vmem:[%s1509 + $0x10] sm:$0xff]
        %v1513 = vld [vmem:[%s1509 + $0x18] sm:$0xff]
        %v1514 = vld [vmem:[%s1509 + $0x20] sm:$0xff]
        %v1515 = vld [vmem:[%s1509 + $0x28] sm:$0xff]
        %v1516 = vld [vmem:[%s1509 + $0x30] sm:$0xff]
        %v1517 = vld [vmem:[%s1509 + $0x38] sm:$0xff]
        %v1518 = vld [vmem:[%s1509 + $0x40] sm:$0xff]
        %v1519 = vld [vmem:[%s1509 + $0x48] sm:$0xff]
        %v1520 = vld [vmem:[%s1509 + $0x50] sm:$0xff]
        %v1521 = vld [vmem:[%s1509 + $0x58] sm:$0xff]
        %v1522 = vld [vmem:[%s1509 + $0x60] sm:$0xff]
        %v1523 = vld [vmem:[%s1509 + $0x68] sm:$0xff]
        %v1524 = vld [vmem:[%s1509 + $0x70] sm:$0xff]
        %v1525 = vld [vmem:[%s1509 + $0x78] sm:$0xff]
        %1526 = vmatprep.subr.mxu0 0.0
        %1527 = vmatpush1.msra.mxu0 %v1510
        %1528 = vmatprep.subr.mxu0 0.0
        %1529 = vmatpush1.msra.mxu0 %v1511
        %1530 = vmatprep.subr.mxu0 0.0
        %1531 = vmatpush1.msra.mxu0 %v1512
        %1532 = vmatprep.subr.mxu0 0.0
        %1533 = vmatpush1.msra.mxu0 %v1513
        %1534 = vmatprep.subr.mxu0 0.0
        %1535 = vmatpush1.msra.mxu0 %v1514
        %1536 = vmatprep.subr.mxu0 0.0
        %1537 = vmatpush1.msra.mxu0 %v1515
        %1538 = vmatprep.subr.mxu0 0.0
        %1539 = vmatpush1.msra.mxu0 %v1516
        %1540 = vmatprep.subr.mxu0 0.0
        %1541 = vmatpush1.msra.mxu0 %v1517
        %1542 = vmatprep.subr.mxu0 0.0
        %1543 = vmatpush1.msra.mxu0 %v1518
        %1544 = vmatprep.subr.mxu0 0.0
        %1545 = vmatpush1.msra.mxu0 %v1519
        %1546 = vmatprep.subr.mxu0 0.0
        %1547 = vmatpush1.msra.mxu0 %v1520
        %1548 = vmatprep.subr.mxu0 0.0
        %1549 = vmatpush1.msra.mxu0 %v1521
        %1550 = vmatprep.subr.mxu0 0.0
        %1551 = vmatpush1.msra.mxu0 %v1522
        %1552 = vmatprep.subr.mxu0 0.0
        %1553 = vmatpush1.msra.mxu0 %v1523
        %1554 = vmatprep.subr.mxu0 0.0
        %1555 = vmatpush1.msra.mxu0 %v1524
        %1556 = vmatprep.subr.mxu0 0.0
        %1557 = vmatpush1.msra.mxu0 %v1525
        %1558 = vmatprep.subr.mxu0 0.0
        %1559 = vmatpush1.msra.mxu0 0.0
        %1560 = vmatprep.subr.mxu0 0.0
        %1561 = vmatpush1.msra.mxu0 0.0
        %1562 = vmatprep.subr.mxu0 0.0
        %1563 = vmatpush1.msra.mxu0 0.0
        %1564 = vmatprep.subr.mxu0 0.0
        %1565 = vmatpush1.msra.mxu0 0.0
        %1566 = vmatprep.subr.mxu0 0.0
        %1567 = vmatpush1.msra.mxu0 0.0
        %1568 = vmatprep.subr.mxu0 0.0
        %1569 = vmatpush1.msra.mxu0 0.0
        %1570 = vmatprep.subr.mxu0 0.0
        %1571 = vmatpush1.msra.mxu0 0.0
        %1572 = vmatprep.subr.mxu0 0.0
        %1573 = vmatpush1.msra.mxu0 0.0
        %1574 = vmatprep.subr.mxu0 0.0
        %1575 = vmatpush1.msra.mxu0 0.0
        %1576 = vmatprep.subr.mxu0 0.0
        %1577 = vmatpush1.msra.mxu0 0.0
        %1578 = vmatprep.subr.mxu0 0.0
        %1579 = vmatpush1.msra.mxu0 0.0
        %1580 = vmatprep.subr.mxu0 0.0
        %1581 = vmatpush1.msra.mxu0 0.0
        %1582 = vmatprep.subr.mxu0 0.0
        %1583 = vmatpush1.msra.mxu0 0.0
        %1584 = vmatprep.subr.mxu0 0.0
        %1585 = vmatpush1.msra.mxu0 0.0
        %1586 = vmatprep.subr.mxu0 0.0
        %1587 = vmatpush1.msra.mxu0 0.0
        %1588 = vmatprep.subr.mxu0 0.0
        %1589 = vmatpush1.msra.mxu0 0.0
        %1590 = vmatprep.mubr.f32.mxu0 0.0
        %1591 = vmatmul.mubr.f32.gmra.mrb[0].mxu0 %v1508
        %v1592 = vpop.f32.mrb[0].mxu0
        %v1593 = vadd.f32 0.0, %v1592
        %v1594 = vpop.f32.mrb[0].mxu0
        %1595 = vmatprep.mubr.f32.mxu0 0.0
        %1596 = vmatmul.mubr.f32.gmra.mrb[0].mxu0 %v1505
        %v1597 = vpop.f32.mrb[0].mxu0
        %v1598 = vadd.f32 0.0, %v1597
        %v1599 = vpop.f32.mrb[0].mxu0
        %1600 = vdwg.mxu0
        %v1602 = vlaneseq
        %v1603 = vshrl.u32 %v1602, 7
        %v1604 = vsub.s32 0, %v1603
        %v1605 = vrot.slane %v1500, %v1604
        %v1607 = vadd.f32 %v1605, %v1593
        %v1608 = vadd.f32 %v1605, %v1598
        %v1609 = vrot.slane %v1497, 6
        %v1610 = vrot.slane %v1498, 6
        %v1611 = vsel %vm483, %v1609, %v1610
        %v1614 = vsel %vm483, 0.0, %v1609
        %s1615 = scalar_lea.vmem %s5, 512
        %v1616 = vld [vmem:[%s1615] sm:$0xff]
        %v1617 = vld [vmem:[%s1615 + $0x8] sm:$0xff]
        %v1618 = vld [vmem:[%s1615 + $0x10] sm:$0xff]
        %v1619 = vld [vmem:[%s1615 + $0x18] sm:$0xff]
        %v1620 = vld [vmem:[%s1615 + $0x20] sm:$0xff]
        %v1621 = vld [vmem:[%s1615 + $0x28] sm:$0xff]
        %v1622 = vld [vmem:[%s1615 + $0x30] sm:$0xff]
        %v1623 = vld [vmem:[%s1615 + $0x38] sm:$0xff]
        %v1624 = vld [vmem:[%s1615 + $0x40] sm:$0xff]
        %v1625 = vld [vmem:[%s1615 + $0x48] sm:$0xff]
        %v1626 = vld [vmem:[%s1615 + $0x50] sm:$0xff]
        %v1627 = vld [vmem:[%s1615 + $0x58] sm:$0xff]
        %v1628 = vld [vmem:[%s1615 + $0x60] sm:$0xff]
        %v1629 = vld [vmem:[%s1615 + $0x68] sm:$0xff]
        %v1630 = vld [vmem:[%s1615 + $0x70] sm:$0xff]
        %v1631 = vld [vmem:[%s1615 + $0x78] sm:$0xff]
        %1632 = vmatprep.subr.mxu0 0.0
        %1633 = vmatpush1.msra.mxu0 %v1616
        %1634 = vmatprep.subr.mxu0 0.0
        %1635 = vmatpush1.msra.mxu0 %v1617
        %1636 = vmatprep.subr.mxu0 0.0
        %1637 = vmatpush1.msra.mxu0 %v1618
        %1638 = vmatprep.subr.mxu0 0.0
        %1639 = vmatpush1.msra.mxu0 %v1619
        %1640 = vmatprep.subr.mxu0 0.0
        %1641 = vmatpush1.msra.mxu0 %v1620
        %1642 = vmatprep.subr.mxu0 0.0
        %1643 = vmatpush1.msra.mxu0 %v1621
        %1644 = vmatprep.subr.mxu0 0.0
        %1645 = vmatpush1.msra.mxu0 %v1622
        %1646 = vmatprep.subr.mxu0 0.0
        %1647 = vmatpush1.msra.mxu0 %v1623
        %1648 = vmatprep.subr.mxu0 0.0
        %1649 = vmatpush1.msra.mxu0 %v1624
        %1650 = vmatprep.subr.mxu0 0.0
        %1651 = vmatpush1.msra.mxu0 %v1625
        %1652 = vmatprep.subr.mxu0 0.0
        %1653 = vmatpush1.msra.mxu0 %v1626
        %1654 = vmatprep.subr.mxu0 0.0
        %1655 = vmatpush1.msra.mxu0 %v1627
        %1656 = vmatprep.subr.mxu0 0.0
        %1657 = vmatpush1.msra.mxu0 %v1628
        %1658 = vmatprep.subr.mxu0 0.0
        %1659 = vmatpush1.msra.mxu0 %v1629
        %1660 = vmatprep.subr.mxu0 0.0
        %1661 = vmatpush1.msra.mxu0 %v1630
        %1662 = vmatprep.subr.mxu0 0.0
        %1663 = vmatpush1.msra.mxu0 %v1631
        %1664 = vmatprep.subr.mxu0 0.0
        %1665 = vmatpush1.msra.mxu0 0.0
        %1666 = vmatprep.subr.mxu0 0.0
        %1667 = vmatpush1.msra.mxu0 0.0
        %1668 = vmatprep.subr.mxu0 0.0
        %1669 = vmatpush1.msra.mxu0 0.0
        %1670 = vmatprep.subr.mxu0 0.0
        %1671 = vmatpush1.msra.mxu0 0.0
        %1672 = vmatprep.subr.mxu0 0.0
        %1673 = vmatpush1.msra.mxu0 0.0
        %1674 = vmatprep.subr.mxu0 0.0
        %1675 = vmatpush1.msra.mxu0 0.0
        %1676 = vmatprep.subr.mxu0 0.0
        %1677 = vmatpush1.msra.mxu0 0.0
        %1678 = vmatprep.subr.mxu0 0.0
        %1679 = vmatpush1.msra.mxu0 0.0
        %1680 = vmatprep.subr.mxu0 0.0
        %1681 = vmatpush1.msra.mxu0 0.0
        %1682 = vmatprep.subr.mxu0 0.0
        %1683 = vmatpush1.msra.mxu0 0.0
        %1684 = vmatprep.subr.mxu0 0.0
        %1685 = vmatpush1.msra.mxu0 0.0
        %1686 = vmatprep.subr.mxu0 0.0
        %1687 = vmatpush1.msra.mxu0 0.0
        %1688 = vmatprep.subr.mxu0 0.0
        %1689 = vmatpush1.msra.mxu0 0.0
        %1690 = vmatprep.subr.mxu0 0.0
        %1691 = vmatpush1.msra.mxu0 0.0
        %1692 = vmatprep.subr.mxu0 0.0
        %1693 = vmatpush1.msra.mxu0 0.0
        %1694 = vmatprep.subr.mxu0 0.0
        %1695 = vmatpush1.msra.mxu0 0.0
        %1696 = vmatprep.mubr.f32.mxu0 0.0
        %1697 = vmatmul.mubr.f32.gmra.mrb[0].mxu0 %v1614
        %v1698 = vpop.f32.mrb[0].mxu0
        %v1699 = vadd.f32 0.0, %v1698
        %v1700 = vpop.f32.mrb[0].mxu0
        %1701 = vmatprep.mubr.f32.mxu0 0.0
        %1702 = vmatmul.mubr.f32.gmra.mrb[0].mxu0 %v1611
        %v1703 = vpop.f32.mrb[0].mxu0
        %v1704 = vadd.f32 0.0, %v1703
        %v1705 = vpop.f32.mrb[0].mxu0
        %1706 = vdwg.mxu0
        %v1707 = vadd.f32 %v1607, %v1699
        %v1708 = vadd.f32 %v1608, %v1704
        %s1709 = scalar_lea.vmem %s5, 640
        %v1710 = vld [vmem:[%s1709] sm:$0xff]
        %v1711 = vld [vmem:[%s1709 + $0x8] sm:$0xff]
        %v1712 = vld [vmem:[%s1709 + $0x10] sm:$0xff]
        %v1713 = vld [vmem:[%s1709 + $0x18] sm:$0xff]
        %v1714 = vld [vmem:[%s1709 + $0x20] sm:$0xff]
        %v1715 = vld [vmem:[%s1709 + $0x28] sm:$0xff]
        %v1716 = vld [vmem:[%s1709 + $0x30] sm:$0xff]
        %v1717 = vld [vmem:[%s1709 + $0x38] sm:$0xff]
        %v1718 = vld [vmem:[%s1709 + $0x40] sm:$0xff]
        %v1719 = vld [vmem:[%s1709 + $0x48] sm:$0xff]
        %v1720 = vld [vmem:[%s1709 + $0x50] sm:$0xff]
        %v1721 = vld [vmem:[%s1709 + $0x58] sm:$0xff]
        %v1722 = vld [vmem:[%s1709 + $0x60] sm:$0xff]
        %v1723 = vld [vmem:[%s1709 + $0x68] sm:$0xff]
        %v1724 = vld [vmem:[%s1709 + $0x70] sm:$0xff]
        %v1725 = vld [vmem:[%s1709 + $0x78] sm:$0xff]
        %1726 = vmatprep.subr.mxu0 0.0
        %1727 = vmatpush1.msra.mxu0 %v1710
        %1728 = vmatprep.subr.mxu0 0.0
        %1729 = vmatpush1.msra.mxu0 %v1711
        %1730 = vmatprep.subr.mxu0 0.0
        %1731 = vmatpush1.msra.mxu0 %v1712
        %1732 = vmatprep.subr.mxu0 0.0
        %1733 = vmatpush1.msra.mxu0 %v1713
        %1734 = vmatprep.subr.mxu0 0.0
        %1735 = vmatpush1.msra.mxu0 %v1714
        %1736 = vmatprep.subr.mxu0 0.0
        %1737 = vmatpush1.msra.mxu0 %v1715
        %1738 = vmatprep.subr.mxu0 0.0
        %1739 = vmatpush1.msra.mxu0 %v1716
        %1740 = vmatprep.subr.mxu0 0.0
        %1741 = vmatpush1.msra.mxu0 %v1717
        %1742 = vmatprep.subr.mxu0 0.0
        %1743 = vmatpush1.msra.mxu0 %v1718
        %1744 = vmatprep.subr.mxu0 0.0
        %1745 = vmatpush1.msra.mxu0 %v1719
        %1746 = vmatprep.subr.mxu0 0.0
        %1747 = vmatpush1.msra.mxu0 %v1720
        %1748 = vmatprep.subr.mxu0 0.0
        %1749 = vmatpush1.msra.mxu0 %v1721
        %1750 = vmatprep.subr.mxu0 0.0
        %1751 = vmatpush1.msra.mxu0 %v1722
        %1752 = vmatprep.subr.mxu0 0.0
        %1753 = vmatpush1.msra.mxu0 %v1723
        %1754 = vmatprep.subr.mxu0 0.0
        %1755 = vmatpush1.msra.mxu0 %v1724
        %1756 = vmatprep.subr.mxu0 0.0
        %1757 = vmatpush1.msra.mxu0 %v1725
        %1758 = vmatprep.subr.mxu0 0.0
        %1759 = vmatpush1.msra.mxu0 0.0
        %1760 = vmatprep.subr.mxu0 0.0
        %1761 = vmatpush1.msra.mxu0 0.0
        %1762 = vmatprep.subr.mxu0 0.0
        %1763 = vmatpush1.msra.mxu0 0.0
        %1764 = vmatprep.subr.mxu0 0.0
        %1765 = vmatpush1.msra.mxu0 0.0
        %1766 = vmatprep.subr.mxu0 0.0
        %1767 = vmatpush1.msra.mxu0 0.0
        %1768 = vmatprep.subr.mxu0 0.0
        %1769 = vmatpush1.msra.mxu0 0.0
        %1770 = vmatprep.subr.mxu0 0.0
        %1771 = vmatpush1.msra.mxu0 0.0
        %1772 = vmatprep.subr.mxu0 0.0
        %1773 = vmatpush1.msra.mxu0 0.0
        %1774 = vmatprep.subr.mxu0 0.0
        %1775 = vmatpush1.msra.mxu0 0.0
        %1776 = vmatprep.subr.mxu0 0.0
        %1777 = vmatpush1.msra.mxu0 0.0
        %1778 = vmatprep.subr.mxu0 0.0
        %1779 = vmatpush1.msra.mxu0 0.0
        %1780 = vmatprep.subr.mxu0 0.0
        %1781 = vmatpush1.msra.mxu0 0.0
        %1782 = vmatprep.subr.mxu0 0.0
        %1783 = vmatpush1.msra.mxu0 0.0
        %1784 = vmatprep.subr.mxu0 0.0
        %1785 = vmatpush1.msra.mxu0 0.0
        %1786 = vmatprep.subr.mxu0 0.0
        %1787 = vmatpush1.msra.mxu0 0.0
        %1788 = vmatprep.subr.mxu0 0.0
        %1789 = vmatpush1.msra.mxu0 0.0
        %1790 = vmatprep.mubr.f32.mxu0 0.0
        %1791 = vmatmul.mubr.f32.gmra.mrb[0].mxu0 %v1497
        %v1792 = vpop.f32.mrb[0].mxu0
        %v1793 = vadd.f32 0.0, %v1792
        %v1794 = vpop.f32.mrb[0].mxu0
        %1795 = vmatprep.mubr.f32.mxu0 0.0
        %1796 = vmatmul.mubr.f32.gmra.mrb[0].mxu0 %v1498
        %v1797 = vpop.f32.mrb[0].mxu0
        %v1798 = vadd.f32 0.0, %v1797
        %v1799 = vpop.f32.mrb[0].mxu0
        %1800 = vdwg.mxu0
        %v1801 = vadd.f32 %v1707, %v1793
        %v1802 = vadd.f32 %v1708, %v1798
        %v1803 = vmax.f32 %v1801, 0.0
        %v1804 = vmax.f32 %v1802, 0.0
        %v1805 = vadd.f32 %v1803, %v1190
        %v1806 = vadd.f32 %v1804, %v1191
        %v1807 = vmax.f32 %v1805, 0.0
        %v1808 = vmax.f32 %v1806, 0.0
        %v1809 = vlaneseq
        %v1810 = vand.u32 %v1809, 127
        %1811 = vadd.xlane.f32.xlu0 %v1807
        %v1812 = vpop.xlane.xlu0 %1811
        %1813 = vadd.xlane.f32.xlu0 %v1808
        %v1814 = vpop.xlane.xlu0 %1813
        %v1815 = vmul.f32 %v1812, 0.03125
        %v1816 = vmul.f32 %v1814, 0.03125
        %vm1817 = vcmp.lt.s32.totalorder %v1810, 32
        %v1818 = vsub.f32 %v1807, %v1815
        %v1819 = vsub.f32 %v1808, %v1816
        %v1820 = vsel %vm1817, %v1818, 0.0
        %v1821 = vsel %vm1817, %v1819, 0.0
        %v1822 = vmul.f32 %v1820, %v1820
        %v1823 = vmul.f32 %v1821, %v1821
        %1824 = vadd.xlane.f32.xlu0 %v1822
        %v1825 = vpop.xlane.xlu0 %1824
        %1826 = vadd.xlane.f32.xlu0 %v1823
        %v1827 = vpop.xlane.xlu0 %1826
        %v1828 = vmul.f32 %v1825, 0.03125
        %v1829 = vmul.f32 %v1827, 0.03125
        %v1830 = vadd.f32 %v1828, 1e-05
        %v1831 = vadd.f32 %v1829, 1e-05
        %v1832 = vrsqrt.pop %v1830
        %v1833 = vrsqrt.pop %v1831
        %v1834 = vmul.f32 %v1818, %v1832
        %v1835 = vmul.f32 %v1819, %v1833
        %v1836 = vld [vmem:[%s9] sm:$0x1]
        %v1838 = vlaneseq
        %v1839 = vshrl.u32 %v1838, 7
        %v1840 = vsub.s32 0, %v1839
        %v1841 = vrot.slane %v1836, %v1840
        %v1843 = vmul.f32 %v1834, %v1841
        %v1844 = vmul.f32 %v1835, %v1841
        %v1845 = vld [vmem:[%s10] sm:$0x1]
        %v1847 = vlaneseq
        %v1848 = vshrl.u32 %v1847, 7
        %v1849 = vsub.s32 0, %v1848
        %v1850 = vrot.slane %v1845, %v1849
        %v1852 = vadd.f32 %v1843, %v1850
        %v1853 = vadd.f32 %v1844, %v1850
        %1854 = vst [vmem:[%s379] sm:$0xff] %v1852
        %1855 = vst [vmem:[%s379 + $0x8] sm:$0xff] %v1853
        %s1856 = sand.u32 %s269, 1
        %s1857 = scalar_lea.sflag [#allocation3], %s1856
        %s1858 = sand.u32 %s269, 1
        %s1859 = smul.addr %s1858, 16
        %s1860 = scalar_lea.vmem [#allocation2], %s1859
        // Predicated region
        $region65: #{forward_pallas.1} parent=63 // pred_check
          %p1861 = pneg %p279
        $region66: #{forward_pallas.1} parent=63 // pred_check_branch
          %1863 = sbr.rel (%p1861) target = $region68
        $region67: #{forward_pallas.1} parent=63 // pred_region
          %s1865 = ssub.s32 256, 256
          %1866 = vsyncadd %s1857, %s1865
          %s1867 = smul.addr %s25, 2
          %s1868 = smul.addr %s1867, 128
          %s1869 = scalar_lea.hbm %s11, %s1868
          %s1870 = sshll.u32 %s1860, 4
          %s1871 = int_to_ptr.vmem [resolvable:$true] %s1870
          %1876 = dma.vmem_to_hbm [thread:$0]  %s1871, 256, %s1869, %s1857, 128, 128, 8
        $region68: #{forward_pallas.1} parent=63 // pred_fallthru
          _
      $region64: #{forward_pallas.1} parent=5 // pred_fallthru
        _
      %p1877 = scmp.le.s32.totalorder 2, %s20
      // Predicated region
      $region69: #{forward_pallas.1} parent=5 // pred_check
        %p1878 = pneg %p1877
      $region70: #{forward_pallas.1} parent=5 // pred_check_branch
        %1880 = sbr.rel (%p1878) target = $region72
      $region71: #{forward_pallas.1} parent=5 // pred_region
        %s1881 = ssub.s32 %s20, 2
        // Predicated region
        $region73: #{forward_pallas.1} parent=71 // pred_check
          %p1882 = pneg %p285
        $region74: #{forward_pallas.1} parent=71 // pred_check_branch
          %1884 = sbr.rel (%p1882) target = $region76
        $region75: #{forward_pallas.1} parent=71 // pred_region
          %s1885 = sand.u32 %s270, 1
          %s1886 = scalar_lea.sflag [#allocation3], %s1885
          %s1887 = sand.u32 %s270, 1
          %s1888 = smul.addr %s1887, 16
          %s1889 = scalar_lea.vmem [#allocation2], %s1888
          %1890 = dma.done %s1886, 256
        $region76: #{forward_pallas.1} parent=71 // pred_fallthru
          _
      $region72: #{forward_pallas.1} parent=5 // pred_fallthru
        _
    $region6: #{forward_pallas.1} parent=1 // loop_footer
      %s24 = sadd.s32 1, %s20
    $region7: #{forward_pallas.1} parent=1 // loop_footer_branch
      %19 = sbr.rel target = $region3
    $region8: #{forward_pallas.1} parent=1 // loop_exit
      _
    %1891 = vsyncpa [#allocation3], 1
    %s1892 = scalar_lea.sflag [#allocation3], 1
    %1893 = vsyncpa %s1892, 1

</llo_original>
